<compile_context>
chip_gen: v5e
topology: v5e:2x2
jax: 0.10.0
libtpu: 0.0.40
codegen_flags: <defaults>
</compile_context>

<pallas_src>
import math

import jax
import jax.numpy as jnp
import numpy as np
from jax.experimental import pallas as pl

# ---------------------------------------------------------------- config ----
B, T = 2, 8                   # batch, sequence length
D_MODEL, NHEAD = 32, 4        # model width, attention heads
DK = D_MODEL // NHEAD
D_FF = 64                     # Decoder_Layer feed-forward hidden size
N_LAYERS = 2                  # num_decoder_layers (only the last one reaches the output)
BT = B * T
NEG_INF = -1e9
LANES = 128                   # host-side pad width (one VMEM lane tile)

# ------------------------------------------------- parameter-slab row map ---
P_WQT = 0                     # 32 rows : Wq^T   (pre-scaled by 1/sqrt(DK))
P_WKT = 32                    # 32 rows : Wk^T
P_WVT = 64                    # 32 rows : Wv^T
P_WO  = 96                    # 32 rows : Wo
P_W2  = 128                   # 64 rows : FFN W2 (64, 32)
P_W1  = 192                   # 32 rows : FFN W1 (32, 64)
P_BO  = 224                   # 1 row   : attention output bias
P_B2  = 225                   # 1 row   : FFN second bias
P_LN1G, P_LN1B = 226, 227
P_LN2G, P_LN2B = 228, 229
P_PEF, P_PEP = 230, 231       # PE frequency row, PE phase row
P_B1  = 232                   # 1 row   : FFN first bias (64 lanes)
P_BQ  = 233                   # 4 rows  : per-head q bias (pre-scaled), lanes 0:DK
P_BK  = 237                   # 4 rows  : per-head k bias
P_BV  = 241                   # 4 rows  : per-head v bias
P_ROWS = 245

# ------------------------------------------------------ data-slab row map ---
D_Q = 0                       # BT rows : query sequence (batch folded)
D_KV = BT                     # BT rows : key/value sequence
D_PT = 2 * BT                 # BT rows : pred_time (lane 0)
D_BIAS = 3 * BT               # NHEAD*BT rows : additive block-diag mask bias
D_ROWS = 3 * BT + NHEAD * BT


# ------------------------------------------------------------------ kernel --
def decoder_p_kernel(data_ref, par_ref, out_ref):
    """Fused Decoder_p forward: all B*T rows and all heads in one invocation."""
    f32, bf16 = jnp.float32, jnp.bfloat16
    dn = (((1,), (1,)), ((), ()))          # contract dim 1 of both operands

    q_in = data_ref[D_Q:D_Q + BT, 0:D_MODEL]                 # (BT, D)
    kv_in = data_ref[D_KV:D_KV + BT, 0:D_MODEL]              # (BT, D)
    pt = data_ref[D_PT:D_PT + BT, 0:1]                       # (BT, 1)
    bias_all = data_ref[D_BIAS:D_BIAS + NHEAD * BT, 0:BT]    # (NHEAD*BT, BT)

    def row(r, w=D_MODEL):                                   # (1, w) param row
        return par_ref[r:r + 1, 0:w]

    def layernorm(x, g, b):
        mu = jnp.mean(x, axis=-1, keepdims=True)
        var = jnp.mean((x - mu) ** 2, axis=-1, keepdims=True)
        return (x - mu) * jax.lax.rsqrt(var + 1e-5) * g + b

    # ---- q = q + positional_encoding(pred_time): single sin (cos folded via phase)
    ang = pt * row(P_PEF) + row(P_PEP)
    q_pe = q_in + jnp.sin(ang)                               # (BT, D) f32

    q_bf = q_pe.astype(bf16)
    kv_bf = kv_in.astype(bf16)

    # ---- per-head Q/K/V projections (weights host-sliced -> no lane slicing) --
    scores, v_heads = [], []
    for h in range(NHEAD):                                   # unrolled, 4 heads
        wq_t = par_ref[P_WQT + h * DK:P_WQT + (h + 1) * DK, 0:D_MODEL].astype(bf16)
        wk_t = par_ref[P_WKT + h * DK:P_WKT + (h + 1) * DK, 0:D_MODEL].astype(bf16)
        wv_t = par_ref[P_WVT + h * DK:P_WVT + (h + 1) * DK, 0:D_MODEL].astype(bf16)
        qh = (jax.lax.dot_general(q_bf, wq_t, dn, preferred_element_type=f32)
              + par_ref[P_BQ + h:P_BQ + h + 1, 0:DK])        # (BT, DK) f32, pre-scaled
        kh = (jax.lax.dot_general(kv_bf, wk_t, dn, preferred_element_type=f32)
              + par_ref[P_BK + h:P_BK + h + 1, 0:DK])
        vh = (jax.lax.dot_general(kv_bf, wv_t, dn, preferred_element_type=f32)
              + par_ref[P_BV + h:P_BV + h + 1, 0:DK])
        s = jax.lax.dot_general(qh.astype(bf16), kh.astype(bf16), dn,
                                preferred_element_type=f32)  # (BT, BT)
        scores.append(s)
        v_heads.append(vh.astype(bf16))

    # ---- softmax batched across heads (sublane-stacked scores) ----------------
    s_all = jnp.concatenate(scores, axis=0) + bias_all       # (NHEAD*BT, BT)
    m = jnp.max(s_all, axis=-1, keepdims=True)
    e = jnp.exp(s_all - m)                                   # masked entries -> 0
    p_all = e * pl.reciprocal(jnp.sum(e, axis=-1, keepdims=True), approx=True)

    # ---- per-head PV + accumulated output projection (no lane concat) ---------
    attn = jnp.zeros((BT, D_MODEL), f32)
    for h in range(NHEAD):
        p_h = p_all[h * BT:(h + 1) * BT, :].astype(bf16)     # sublane slice, cheap
        ctx = jnp.dot(p_h, v_heads[h], preferred_element_type=f32)       # (BT, DK)
        wo_h = par_ref[P_WO + h * DK:P_WO + (h + 1) * DK, 0:D_MODEL].astype(bf16)
        attn = attn + jnp.dot(ctx.astype(bf16), wo_h, preferred_element_type=f32)
    attn = attn + row(P_BO)

    # ---- residual + LayerNorm1 ------------------------------------------------
    x1 = layernorm(attn + q_pe, row(P_LN1G), row(P_LN1B))

    # ---- feed-forward (Linear -> ReLU -> Linear) + residual + LayerNorm2 ------
    w1 = par_ref[P_W1:P_W1 + D_MODEL, 0:D_FF].astype(bf16)   # (32, 64)
    w2 = par_ref[P_W2:P_W2 + D_FF, 0:D_MODEL].astype(bf16)   # (64, 32)
    h1 = jnp.maximum(
        jnp.dot(x1.astype(bf16), w1, preferred_element_type=f32) + row(P_B1, D_FF),
        0.0)
    ff = jnp.dot(h1.astype(bf16), w2, preferred_element_type=f32) + row(P_B2)

    out_ref[...] = layernorm(ff + x1, row(P_LN2G), row(P_LN2B))


# ------------------------------------------------------------ host packing --
def _pad_lanes(x):
    x = jnp.asarray(x, jnp.float32)
    return jnp.pad(x, ((0, 0), (0, LANES - x.shape[1])))


def pack_params(L):
    """Pack the last layer's parameters into one (P_ROWS, 128) f32 slab (done once)."""
    scale = 1.0 / math.sqrt(DK)
    d = jnp.arange(D_MODEL)
    half2 = (2 * (d // 2)).astype(jnp.float32)
    # positional_encoding is not defined in the provided spec; standard transformer
    # sin/cos encoding driven by pred_time is assumed (matches the JAX reference).
    pe_freq = jnp.exp(-(math.log(10000.0) / D_MODEL) * half2)            # (D,)
    pe_phase = jnp.where(d % 2 == 0, 0.0, math.pi / 2.0).astype(jnp.float32)

    rows = [
        _pad_lanes((L["wq"] * scale).T),      # P_WQT  (scale folded in)
        _pad_lanes(L["wk"].T),                # P_WKT
        _pad_lanes(L["wv"].T),                # P_WVT
        _pad_lanes(L["wo"]),                  # P_WO
        _pad_lanes(L["ff_w2"]),               # P_W2
        _pad_lanes(L["ff_w1"]),               # P_W1
        _pad_lanes(L["bo"]), _pad_lanes(L["ff_b2"]),
        _pad_lanes(L["ln1_g"]), _pad_lanes(L["ln1_b"]),
        _pad_lanes(L["ln2_g"]), _pad_lanes(L["ln2_b"]),
        _pad_lanes(pe_freq[None, :]), _pad_lanes(pe_phase[None, :]),
        _pad_lanes(L["ff_b1"]),
        _pad_lanes((L["bq"] * scale).reshape(NHEAD, DK)),   # P_BQ (scale folded in)
        _pad_lanes(L["bk"].reshape(NHEAD, DK)),             # P_BK
        _pad_lanes(L["bv"].reshape(NHEAD, DK)),             # P_BV
    ]
    slab = jnp.concatenate(rows, axis=0)
    assert slab.shape == (P_ROWS, LANES)
    return slab


def pack_data(q, kv, pred_time, mask):
    """Fold batch, build block-diagonal additive mask bias, pack into one slab."""
    q2 = q.reshape(BT, D_MODEL)
    kv2 = kv.reshape(BT, D_MODEL)
    pt2 = pred_time.reshape(BT, 1).astype(jnp.float32)

    bias_small = jnp.where(mask == 0.0, NEG_INF, 0.0).astype(jnp.float32)  # (B,T,T)
    neg = jnp.full((T, T), NEG_INF, jnp.float32)
    brows = []
    for b in range(B):
        blocks = [bias_small[b] if bb == b else neg for bb in range(B)]
        brows.append(jnp.concatenate(blocks, axis=1))
    bias_bd = jnp.concatenate(brows, axis=0)                 # (BT, BT) block-diag
    bias_all = jnp.tile(bias_bd, (NHEAD, 1))                 # (NHEAD*BT, BT)

    slab = jnp.concatenate(
        [_pad_lanes(q2), _pad_lanes(kv2), _pad_lanes(pt2), _pad_lanes(bias_all)],
        axis=0)
    assert slab.shape == (D_ROWS, LANES)
    return slab


# ----------------------------------------------------------------- wrapper --
@jax.jit
def decoder_p_pallas(param_slab, q, kv, mask, pred_time):
    data_slab = pack_data(q, kv, pred_time, mask)
    out = pl.pallas_call(
        decoder_p_kernel,
        out_shape=jax.ShapeDtypeStruct((BT, D_MODEL), jnp.float32),
    )(data_slab, param_slab)
    return out.reshape(B, T, D_MODEL)


# ------------------------------------------------------- pure-JAX reference -
def _ref_ln(x, g, b):
    mu = jnp.mean(x, axis=-1, keepdims=True)
    var = jnp.mean((x - mu) ** 2, axis=-1, keepdims=True)
    return (x - mu) / jnp.sqrt(var + 1e-5) * g + b


def _ref_pe(pred_time, d_model):        # (B, T) -> (B, T, D)
    d = jnp.arange(d_model)
    half2 = (2 * (d // 2)).astype(jnp.float32)
    freq = jnp.exp(-(math.log(10000.0) / d_model) * half2)
    ang = pred_time[..., None] * freq
    return jnp.where(d % 2 == 0, jnp.sin(ang), jnp.cos(ang))


def _ref_layer(L, q, kv, mask):
    def split(x):                        # (B,T,D) -> (B,H,T,DK)
        return x.reshape(B, T, NHEAD, DK).transpose(0, 2, 1, 3)
    Q = split(q @ L["wq"] + L["bq"])
    K = split(kv @ L["wk"] + L["bk"])
    V = split(kv @ L["wv"] + L["bv"])
    s = jnp.einsum("bhtk,bhsk->bhts", Q, K) / math.sqrt(DK)
    s = jnp.where(mask[:, None] == 0.0, NEG_INF, s)
    a = jax.nn.softmax(s, axis=-1)
    ctx = jnp.einsum("bhts,bhsk->bhtk", a, V).transpose(0, 2, 1, 3).reshape(B, T, D_MODEL)
    attn = ctx @ L["wo"] + L["bo"]
    x1 = _ref_ln(attn + q, L["ln1_g"], L["ln1_b"])
    ff = jnp.maximum(x1 @ L["ff_w1"] + L["ff_b1"], 0.0) @ L["ff_w2"] + L["ff_b2"]
    return _ref_ln(ff + x1, L["ln2_g"], L["ln2_b"])


def ref_decoder_p(layers, q, kv, mask, pred_time):
    qq = q + _ref_pe(pred_time, D_MODEL)
    x = None
    for L in layers:     # matches the PyTorch loop: q/kv are NOT threaded layer-to-layer
        x = _ref_layer(L, qq, kv, mask)
    return x


# ------------------------------------------------------------------- params -
def init_layer(key):
    ks = jax.random.split(key, 16)
    def w(k, shape):
        return jax.random.normal(k, shape, jnp.float32) * 0.1
    return {
        "wq": w(ks[0], (D_MODEL, D_MODEL)), "bq": w(ks[1], (1, D_MODEL)),
        "wk": w(ks[2], (D_MODEL, D_MODEL)), "bk": w(ks[3], (1, D_MODEL)),
        "wv": w(ks[4], (D_MODEL, D_MODEL)), "bv": w(ks[5], (1, D_MODEL)),
        "wo": w(ks[6], (D_MODEL, D_MODEL)), "bo": w(ks[7], (1, D_MODEL)),
        "ff_w1": w(ks[8], (D_MODEL, D_FF)), "ff_b1": w(ks[9], (1, D_FF)),
        "ff_w2": w(ks[10], (D_FF, D_MODEL)), "ff_b2": w(ks[11], (1, D_MODEL)),
        "ln1_g": 1.0 + w(ks[12], (1, D_MODEL)), "ln1_b": w(ks[13], (1, D_MODEL)),
        "ln2_g": 1.0 + w(ks[14], (1, D_MODEL)), "ln2_b": w(ks[15], (1, D_MODEL)),
    }


# -------------------------------------------------------------------- main --
if __name__ == "__main__":
    key = jax.random.PRNGKey(0)
    kparams, kdata = jax.random.split(key)
    layers = [init_layer(k) for k in jax.random.split(kparams, N_LAYERS)]

    k1, k2, k3 = jax.random.split(kdata, 3)
    q = jax.random.normal(k1, (B, T, D_MODEL), jnp.float32)
    kv = jax.random.normal(k2, (B, T, D_MODEL), jnp.float32)
    mask = jnp.tile(jnp.tril(jnp.ones((T, T), jnp.float32))[None], (B, 1, 1))
    pred_time = jnp.cumsum(
        jax.random.uniform(k3, (B, T), jnp.float32, 0.1, 1.0), axis=1)

    # Only the LAST layer's weights reach the output (the PyTorch loop never
    # feeds x back into q/kv), so that is the layer the kernel evaluates.
    param_slab = pack_params(layers[-1])          # packed once, reused every call

    out = decoder_p_pallas(param_slab, q, kv, mask, pred_time)
    jax.block_until_ready(out)

    ref = ref_decoder_p(layers, q, kv, mask, pred_time)
    assert out.shape == (B, T, D_MODEL)
    # tolerance accounts for bf16 MXU inputs (f32 accumulation) and the EUP
    # approximate reciprocal in the softmax normalization
    np.testing.assert_allclose(np.asarray(out), np.asarray(ref), rtol=2e-2, atol=2e-2)
    print("KERNEL_OK")
</pallas_src>

<mosaic_0001>
module attributes {stable_mosaic.version = 11 : i64} {
  func.func @decoder_p_kernel(%arg0: memref<112x128xf32, #tpu.memory_space<vmem>>, %arg1: memref<245x128xf32, #tpu.memory_space<vmem>>, %arg2: memref<16x32xf32, #tpu.memory_space<vmem>>) attributes {dimension_semantics = [], scalar_prefetch = 0 : i64, scratch_operands = 0 : i64, tpu.core_type = #tpu.core_type<tc>} {
    %c0 = arith.constant 0 : index
    %c0_0 = arith.constant 0 : index
    %0 = vector.load %arg0[%c0, %c0_0] : memref<112x128xf32, #tpu.memory_space<vmem>>, vector<16x32xf32>
    %c16 = arith.constant 16 : index
    %c0_1 = arith.constant 0 : index
    %1 = vector.load %arg0[%c16, %c0_1] : memref<112x128xf32, #tpu.memory_space<vmem>>, vector<16x32xf32>
    %c32 = arith.constant 32 : index
    %c0_2 = arith.constant 0 : index
    %2 = vector.load %arg0[%c32, %c0_2] : memref<112x128xf32, #tpu.memory_space<vmem>>, vector<16x1xf32>
    %c48 = arith.constant 48 : index
    %c0_3 = arith.constant 0 : index
    %3 = vector.load %arg0[%c48, %c0_3] : memref<112x128xf32, #tpu.memory_space<vmem>>, vector<64x16xf32>
    %c230 = arith.constant 230 : index
    %c0_4 = arith.constant 0 : index
    %4 = vector.load %arg1[%c230, %c0_4] : memref<245x128xf32, #tpu.memory_space<vmem>>, vector<1x32xf32>
    %5 = vector.broadcast %2 : vector<16x1xf32> to vector<16x32xf32>
    %6 = vector.broadcast %4 : vector<1x32xf32> to vector<16x32xf32>
    %7 = arith.mulf %5, %6 : vector<16x32xf32>
    %c231 = arith.constant 231 : index
    %c0_5 = arith.constant 0 : index
    %8 = vector.load %arg1[%c231, %c0_5] : memref<245x128xf32, #tpu.memory_space<vmem>>, vector<1x32xf32>
    %9 = vector.broadcast %8 : vector<1x32xf32> to vector<16x32xf32>
    %10 = arith.addf %7, %9 : vector<16x32xf32>
    %11 = math.sin %10 : vector<16x32xf32>
    %12 = arith.addf %0, %11 : vector<16x32xf32>
    %13 = arith.truncf %12 : vector<16x32xf32> to vector<16x32xbf16>
    %14 = arith.truncf %1 : vector<16x32xf32> to vector<16x32xbf16>
    %c0_6 = arith.constant 0 : index
    %c0_7 = arith.constant 0 : index
    %15 = vector.load %arg1[%c0_6, %c0_7] : memref<245x128xf32, #tpu.memory_space<vmem>>, vector<8x32xf32>
    %16 = arith.truncf %15 : vector<8x32xf32> to vector<8x32xbf16>
    %c32_8 = arith.constant 32 : index
    %c0_9 = arith.constant 0 : index
    %17 = vector.load %arg1[%c32_8, %c0_9] : memref<245x128xf32, #tpu.memory_space<vmem>>, vector<8x32xf32>
    %18 = arith.truncf %17 : vector<8x32xf32> to vector<8x32xbf16>
    %c64 = arith.constant 64 : index
    %c0_10 = arith.constant 0 : index
    %19 = vector.load %arg1[%c64, %c0_10] : memref<245x128xf32, #tpu.memory_space<vmem>>, vector<8x32xf32>
    %20 = arith.truncf %19 : vector<8x32xf32> to vector<8x32xbf16>
    %cst = arith.constant dense<0.000000e+00> : vector<16x8xf32>
    %21 = tpu.matmul %13, %16, %cst {dimension_numbers = #tpu.dot_dimension_numbers<[1], [1], [0], [0], [0, 0, 1, 0], [], []>} : vector<16x32xbf16>, vector<8x32xbf16>, vector<16x8xf32> -> vector<16x8xf32>
    %c233 = arith.constant 233 : index
    %c0_11 = arith.constant 0 : index
    %22 = vector.load %arg1[%c233, %c0_11] : memref<245x128xf32, #tpu.memory_space<vmem>>, vector<1x8xf32>
    %23 = vector.broadcast %22 : vector<1x8xf32> to vector<16x8xf32>
    %24 = arith.addf %21, %23 : vector<16x8xf32>
    %cst_12 = arith.constant dense<0.000000e+00> : vector<16x8xf32>
    %25 = tpu.matmul %14, %18, %cst_12 {dimension_numbers = #tpu.dot_dimension_numbers<[1], [1], [0], [0], [0, 0, 1, 0], [], []>} : vector<16x32xbf16>, vector<8x32xbf16>, vector<16x8xf32> -> vector<16x8xf32>
    %c237 = arith.constant 237 : index
    %c0_13 = arith.constant 0 : index
    %26 = vector.load %arg1[%c237, %c0_13] : memref<245x128xf32, #tpu.memory_space<vmem>>, vector<1x8xf32>
    %27 = vector.broadcast %26 : vector<1x8xf32> to vector<16x8xf32>
    %28 = arith.addf %25, %27 : vector<16x8xf32>
    %cst_14 = arith.constant dense<0.000000e+00> : vector<16x8xf32>
    %29 = tpu.matmul %14, %20, %cst_14 {dimension_numbers = #tpu.dot_dimension_numbers<[1], [1], [0], [0], [0, 0, 1, 0], [], []>} : vector<16x32xbf16>, vector<8x32xbf16>, vector<16x8xf32> -> vector<16x8xf32>
    %c241 = arith.constant 241 : index
    %c0_15 = arith.constant 0 : index
    %30 = vector.load %arg1[%c241, %c0_15] : memref<245x128xf32, #tpu.memory_space<vmem>>, vector<1x8xf32>
    %31 = vector.broadcast %30 : vector<1x8xf32> to vector<16x8xf32>
    %32 = arith.addf %29, %31 : vector<16x8xf32>
    %33 = arith.truncf %24 : vector<16x8xf32> to vector<16x8xbf16>
    %34 = arith.truncf %28 : vector<16x8xf32> to vector<16x8xbf16>
    %cst_16 = arith.constant dense<0.000000e+00> : vector<16x16xf32>
    %35 = tpu.matmul %33, %34, %cst_16 {dimension_numbers = #tpu.dot_dimension_numbers<[1], [1], [0], [0], [0, 0, 1, 0], [], []>} : vector<16x8xbf16>, vector<16x8xbf16>, vector<16x16xf32> -> vector<16x16xf32>
    %36 = arith.truncf %32 : vector<16x8xf32> to vector<16x8xbf16>
    %c8 = arith.constant 8 : index
    %c0_17 = arith.constant 0 : index
    %37 = vector.load %arg1[%c8, %c0_17] : memref<245x128xf32, #tpu.memory_space<vmem>>, vector<8x32xf32>
    %38 = arith.truncf %37 : vector<8x32xf32> to vector<8x32xbf16>
    %c40 = arith.constant 40 : index
    %c0_18 = arith.constant 0 : index
    %39 = vector.load %arg1[%c40, %c0_18] : memref<245x128xf32, #tpu.memory_space<vmem>>, vector<8x32xf32>
    %40 = arith.truncf %39 : vector<8x32xf32> to vector<8x32xbf16>
    %c72 = arith.constant 72 : index
    %c0_19 = arith.constant 0 : index
    %41 = vector.load %arg1[%c72, %c0_19] : memref<245x128xf32, #tpu.memory_space<vmem>>, vector<8x32xf32>
    %42 = arith.truncf %41 : vector<8x32xf32> to vector<8x32xbf16>
    %cst_20 = arith.constant dense<0.000000e+00> : vector<16x8xf32>
    %43 = tpu.matmul %13, %38, %cst_20 {dimension_numbers = #tpu.dot_dimension_numbers<[1], [1], [0], [0], [0, 0, 1, 0], [], []>} : vector<16x32xbf16>, vector<8x32xbf16>, vector<16x8xf32> -> vector<16x8xf32>
    %c234 = arith.constant 234 : index
    %c0_21 = arith.constant 0 : index
    %44 = vector.load %arg1[%c234, %c0_21] : memref<245x128xf32, #tpu.memory_space<vmem>>, vector<1x8xf32>
    %45 = vector.broadcast %44 : vector<1x8xf32> to vector<16x8xf32>
    %46 = arith.addf %43, %45 : vector<16x8xf32>
    %cst_22 = arith.constant dense<0.000000e+00> : vector<16x8xf32>
    %47 = tpu.matmul %14, %40, %cst_22 {dimension_numbers = #tpu.dot_dimension_numbers<[1], [1], [0], [0], [0, 0, 1, 0], [], []>} : vector<16x32xbf16>, vector<8x32xbf16>, vector<16x8xf32> -> vector<16x8xf32>
    %c238 = arith.constant 238 : index
    %c0_23 = arith.constant 0 : index
    %48 = vector.load %arg1[%c238, %c0_23] : memref<245x128xf32, #tpu.memory_space<vmem>>, vector<1x8xf32>
    %49 = vector.broadcast %48 : vector<1x8xf32> to vector<16x8xf32>
    %50 = arith.addf %47, %49 : vector<16x8xf32>
    %cst_24 = arith.constant dense<0.000000e+00> : vector<16x8xf32>
    %51 = tpu.matmul %14, %42, %cst_24 {dimension_numbers = #tpu.dot_dimension_numbers<[1], [1], [0], [0], [0, 0, 1, 0], [], []>} : vector<16x32xbf16>, vector<8x32xbf16>, vector<16x8xf32> -> vector<16x8xf32>
    %c242 = arith.constant 242 : index
    %c0_25 = arith.constant 0 : index
    %52 = vector.load %arg1[%c242, %c0_25] : memref<245x128xf32, #tpu.memory_space<vmem>>, vector<1x8xf32>
    %53 = vector.broadcast %52 : vector<1x8xf32> to vector<16x8xf32>
    %54 = arith.addf %51, %53 : vector<16x8xf32>
    %55 = arith.truncf %46 : vector<16x8xf32> to vector<16x8xbf16>
    %56 = arith.truncf %50 : vector<16x8xf32> to vector<16x8xbf16>
    %cst_26 = arith.constant dense<0.000000e+00> : vector<16x16xf32>
    %57 = tpu.matmul %55, %56, %cst_26 {dimension_numbers = #tpu.dot_dimension_numbers<[1], [1], [0], [0], [0, 0, 1, 0], [], []>} : vector<16x8xbf16>, vector<16x8xbf16>, vector<16x16xf32> -> vector<16x16xf32>
    %58 = arith.truncf %54 : vector<16x8xf32> to vector<16x8xbf16>
    %c16_27 = arith.constant 16 : index
    %c0_28 = arith.constant 0 : index
    %59 = vector.load %arg1[%c16_27, %c0_28] : memref<245x128xf32, #tpu.memory_space<vmem>>, vector<8x32xf32>
    %60 = arith.truncf %59 : vector<8x32xf32> to vector<8x32xbf16>
    %c48_29 = arith.constant 48 : index
    %c0_30 = arith.constant 0 : index
    %61 = vector.load %arg1[%c48_29, %c0_30] : memref<245x128xf32, #tpu.memory_space<vmem>>, vector<8x32xf32>
    %62 = arith.truncf %61 : vector<8x32xf32> to vector<8x32xbf16>
    %c80 = arith.constant 80 : index
    %c0_31 = arith.constant 0 : index
    %63 = vector.load %arg1[%c80, %c0_31] : memref<245x128xf32, #tpu.memory_space<vmem>>, vector<8x32xf32>
    %64 = arith.truncf %63 : vector<8x32xf32> to vector<8x32xbf16>
    %cst_32 = arith.constant dense<0.000000e+00> : vector<16x8xf32>
    %65 = tpu.matmul %13, %60, %cst_32 {dimension_numbers = #tpu.dot_dimension_numbers<[1], [1], [0], [0], [0, 0, 1, 0], [], []>} : vector<16x32xbf16>, vector<8x32xbf16>, vector<16x8xf32> -> vector<16x8xf32>
    %c235 = arith.constant 235 : index
    %c0_33 = arith.constant 0 : index
    %66 = vector.load %arg1[%c235, %c0_33] : memref<245x128xf32, #tpu.memory_space<vmem>>, vector<1x8xf32>
    %67 = vector.broadcast %66 : vector<1x8xf32> to vector<16x8xf32>
    %68 = arith.addf %65, %67 : vector<16x8xf32>
    %cst_34 = arith.constant dense<0.000000e+00> : vector<16x8xf32>
    %69 = tpu.matmul %14, %62, %cst_34 {dimension_numbers = #tpu.dot_dimension_numbers<[1], [1], [0], [0], [0, 0, 1, 0], [], []>} : vector<16x32xbf16>, vector<8x32xbf16>, vector<16x8xf32> -> vector<16x8xf32>
    %c239 = arith.constant 239 : index
    %c0_35 = arith.constant 0 : index
    %70 = vector.load %arg1[%c239, %c0_35] : memref<245x128xf32, #tpu.memory_space<vmem>>, vector<1x8xf32>
    %71 = vector.broadcast %70 : vector<1x8xf32> to vector<16x8xf32>
    %72 = arith.addf %69, %71 : vector<16x8xf32>
    %cst_36 = arith.constant dense<0.000000e+00> : vector<16x8xf32>
    %73 = tpu.matmul %14, %64, %cst_36 {dimension_numbers = #tpu.dot_dimension_numbers<[1], [1], [0], [0], [0, 0, 1, 0], [], []>} : vector<16x32xbf16>, vector<8x32xbf16>, vector<16x8xf32> -> vector<16x8xf32>
    %c243 = arith.constant 243 : index
    %c0_37 = arith.constant 0 : index
    %74 = vector.load %arg1[%c243, %c0_37] : memref<245x128xf32, #tpu.memory_space<vmem>>, vector<1x8xf32>
    %75 = vector.broadcast %74 : vector<1x8xf32> to vector<16x8xf32>
    %76 = arith.addf %73, %75 : vector<16x8xf32>
    %77 = arith.truncf %68 : vector<16x8xf32> to vector<16x8xbf16>
    %78 = arith.truncf %72 : vector<16x8xf32> to vector<16x8xbf16>
    %cst_38 = arith.constant dense<0.000000e+00> : vector<16x16xf32>
    %79 = tpu.matmul %77, %78, %cst_38 {dimension_numbers = #tpu.dot_dimension_numbers<[1], [1], [0], [0], [0, 0, 1, 0], [], []>} : vector<16x8xbf16>, vector<16x8xbf16>, vector<16x16xf32> -> vector<16x16xf32>
    %80 = arith.truncf %76 : vector<16x8xf32> to vector<16x8xbf16>
    %c24 = arith.constant 24 : index
    %c0_39 = arith.constant 0 : index
    %81 = vector.load %arg1[%c24, %c0_39] : memref<245x128xf32, #tpu.memory_space<vmem>>, vector<8x32xf32>
    %82 = arith.truncf %81 : vector<8x32xf32> to vector<8x32xbf16>
    %c56 = arith.constant 56 : index
    %c0_40 = arith.constant 0 : index
    %83 = vector.load %arg1[%c56, %c0_40] : memref<245x128xf32, #tpu.memory_space<vmem>>, vector<8x32xf32>
    %84 = arith.truncf %83 : vector<8x32xf32> to vector<8x32xbf16>
    %c88 = arith.constant 88 : index
    %c0_41 = arith.constant 0 : index
    %85 = vector.load %arg1[%c88, %c0_41] : memref<245x128xf32, #tpu.memory_space<vmem>>, vector<8x32xf32>
    %86 = arith.truncf %85 : vector<8x32xf32> to vector<8x32xbf16>
    %cst_42 = arith.constant dense<0.000000e+00> : vector<16x8xf32>
    %87 = tpu.matmul %13, %82, %cst_42 {dimension_numbers = #tpu.dot_dimension_numbers<[1], [1], [0], [0], [0, 0, 1, 0], [], []>} : vector<16x32xbf16>, vector<8x32xbf16>, vector<16x8xf32> -> vector<16x8xf32>
    %c236 = arith.constant 236 : index
    %c0_43 = arith.constant 0 : index
    %88 = vector.load %arg1[%c236, %c0_43] : memref<245x128xf32, #tpu.memory_space<vmem>>, vector<1x8xf32>
    %89 = vector.broadcast %88 : vector<1x8xf32> to vector<16x8xf32>
    %90 = arith.addf %87, %89 : vector<16x8xf32>
    %cst_44 = arith.constant dense<0.000000e+00> : vector<16x8xf32>
    %91 = tpu.matmul %14, %84, %cst_44 {dimension_numbers = #tpu.dot_dimension_numbers<[1], [1], [0], [0], [0, 0, 1, 0], [], []>} : vector<16x32xbf16>, vector<8x32xbf16>, vector<16x8xf32> -> vector<16x8xf32>
    %c240 = arith.constant 240 : index
    %c0_45 = arith.constant 0 : index
    %92 = vector.load %arg1[%c240, %c0_45] : memref<245x128xf32, #tpu.memory_space<vmem>>, vector<1x8xf32>
    %93 = vector.broadcast %92 : vector<1x8xf32> to vector<16x8xf32>
    %94 = arith.addf %91, %93 : vector<16x8xf32>
    %cst_46 = arith.constant dense<0.000000e+00> : vector<16x8xf32>
    %95 = tpu.matmul %14, %86, %cst_46 {dimension_numbers = #tpu.dot_dimension_numbers<[1], [1], [0], [0], [0, 0, 1, 0], [], []>} : vector<16x32xbf16>, vector<8x32xbf16>, vector<16x8xf32> -> vector<16x8xf32>
    %c244 = arith.constant 244 : index
    %c0_47 = arith.constant 0 : index
    %96 = vector.load %arg1[%c244, %c0_47] : memref<245x128xf32, #tpu.memory_space<vmem>>, vector<1x8xf32>
    %97 = vector.broadcast %96 : vector<1x8xf32> to vector<16x8xf32>
    %98 = arith.addf %95, %97 : vector<16x8xf32>
    %99 = arith.truncf %90 : vector<16x8xf32> to vector<16x8xbf16>
    %100 = arith.truncf %94 : vector<16x8xf32> to vector<16x8xbf16>
    %cst_48 = arith.constant dense<0.000000e+00> : vector<16x16xf32>
    %101 = tpu.matmul %99, %100, %cst_48 {dimension_numbers = #tpu.dot_dimension_numbers<[1], [1], [0], [0], [0, 0, 1, 0], [], []>} : vector<16x8xbf16>, vector<16x8xbf16>, vector<16x16xf32> -> vector<16x16xf32>
    %102 = arith.truncf %98 : vector<16x8xf32> to vector<16x8xbf16>
    %103 = tpu.concatenate %35, %57, %79, %101 in 0 : vector<16x16xf32>, vector<16x16xf32>, vector<16x16xf32>, vector<16x16xf32> -> vector<64x16xf32>
    %104 = arith.addf %103, %3 : vector<64x16xf32>
    %cst_49 = arith.constant dense<0xFF800000> : vector<64xf32>
    %105 = vector.multi_reduction <maximumf>, %104, %cst_49 [1] : vector<64x16xf32> to vector<64xf32>
    %106 = vector.shape_cast %105 : vector<64xf32> to vector<64x1xf32>
    %107 = vector.broadcast %106 : vector<64x1xf32> to vector<64x16xf32>
    %108 = arith.subf %104, %107 : vector<64x16xf32>
    %109 = math.exp %108 : vector<64x16xf32>
    %cst_50 = arith.constant dense<0.000000e+00> : vector<64xf32>
    %110 = vector.multi_reduction <add>, %109, %cst_50 [1] : vector<64x16xf32> to vector<64xf32>
    %111 = vector.shape_cast %110 : vector<64xf32> to vector<64x1xf32>
    %112 = tpu.reciprocal %111 {approx = true} : vector<64x1xf32> -> vector<64x1xf32>
    %113 = vector.broadcast %112 : vector<64x1xf32> to vector<64x16xf32>
    %114 = arith.mulf %109, %113 : vector<64x16xf32>
    %cst_51 = arith.constant 0.000000e+00 : f32
    %115 = vector.broadcast %cst_51 : f32 to vector<16x32xf32>
    %116 = vector.extract_strided_slice %114 {offsets = [0, 0], sizes = [16, 16], strides = [1, 1]} : vector<64x16xf32> to vector<16x16xf32>
    %117 = arith.truncf %116 : vector<16x16xf32> to vector<16x16xbf16>
    %cst_52 = arith.constant dense<0.000000e+00> : vector<16x8xf32>
    %118 = tpu.matmul %117, %36, %cst_52 {dimension_numbers = #tpu.dot_dimension_numbers<[1], [0], [0], [1], [0, 0, 1, 1], [], []>} : vector<16x16xbf16>, vector<16x8xbf16>, vector<16x8xf32> -> vector<16x8xf32>
    %c96 = arith.constant 96 : index
    %c0_53 = arith.constant 0 : index
    %119 = vector.load %arg1[%c96, %c0_53] : memref<245x128xf32, #tpu.memory_space<vmem>>, vector<8x32xf32>
    %120 = arith.truncf %119 : vector<8x32xf32> to vector<8x32xbf16>
    %121 = arith.truncf %118 : vector<16x8xf32> to vector<16x8xbf16>
    %cst_54 = arith.constant dense<0.000000e+00> : vector<16x32xf32>
    %122 = tpu.matmul %121, %120, %cst_54 {dimension_numbers = #tpu.dot_dimension_numbers<[1], [0], [0], [1], [0, 0, 1, 1], [], []>} : vector<16x8xbf16>, vector<8x32xbf16>, vector<16x32xf32> -> vector<16x32xf32>
    %123 = arith.addf %115, %122 : vector<16x32xf32>
    %124 = vector.extract_strided_slice %114 {offsets = [16, 0], sizes = [16, 16], strides = [1, 1]} : vector<64x16xf32> to vector<16x16xf32>
    %125 = arith.truncf %124 : vector<16x16xf32> to vector<16x16xbf16>
    %cst_55 = arith.constant dense<0.000000e+00> : vector<16x8xf32>
    %126 = tpu.matmul %125, %58, %cst_55 {dimension_numbers = #tpu.dot_dimension_numbers<[1], [0], [0], [1], [0, 0, 1, 1], [], []>} : vector<16x16xbf16>, vector<16x8xbf16>, vector<16x8xf32> -> vector<16x8xf32>
    %c104 = arith.constant 104 : index
    %c0_56 = arith.constant 0 : index
    %127 = vector.load %arg1[%c104, %c0_56] : memref<245x128xf32, #tpu.memory_space<vmem>>, vector<8x32xf32>
    %128 = arith.truncf %127 : vector<8x32xf32> to vector<8x32xbf16>
    %129 = arith.truncf %126 : vector<16x8xf32> to vector<16x8xbf16>
    %cst_57 = arith.constant dense<0.000000e+00> : vector<16x32xf32>
    %130 = tpu.matmul %129, %128, %cst_57 {dimension_numbers = #tpu.dot_dimension_numbers<[1], [0], [0], [1], [0, 0, 1, 1], [], []>} : vector<16x8xbf16>, vector<8x32xbf16>, vector<16x32xf32> -> vector<16x32xf32>
    %131 = arith.addf %123, %130 : vector<16x32xf32>
    %132 = vector.extract_strided_slice %114 {offsets = [32, 0], sizes = [16, 16], strides = [1, 1]} : vector<64x16xf32> to vector<16x16xf32>
    %133 = arith.truncf %132 : vector<16x16xf32> to vector<16x16xbf16>
    %cst_58 = arith.constant dense<0.000000e+00> : vector<16x8xf32>
    %134 = tpu.matmul %133, %80, %cst_58 {dimension_numbers = #tpu.dot_dimension_numbers<[1], [0], [0], [1], [0, 0, 1, 1], [], []>} : vector<16x16xbf16>, vector<16x8xbf16>, vector<16x8xf32> -> vector<16x8xf32>
    %c112 = arith.constant 112 : index
    %c0_59 = arith.constant 0 : index
    %135 = vector.load %arg1[%c112, %c0_59] : memref<245x128xf32, #tpu.memory_space<vmem>>, vector<8x32xf32>
    %136 = arith.truncf %135 : vector<8x32xf32> to vector<8x32xbf16>
    %137 = arith.truncf %134 : vector<16x8xf32> to vector<16x8xbf16>
    %cst_60 = arith.constant dense<0.000000e+00> : vector<16x32xf32>
    %138 = tpu.matmul %137, %136, %cst_60 {dimension_numbers = #tpu.dot_dimension_numbers<[1], [0], [0], [1], [0, 0, 1, 1], [], []>} : vector<16x8xbf16>, vector<8x32xbf16>, vector<16x32xf32> -> vector<16x32xf32>
    %139 = arith.addf %131, %138 : vector<16x32xf32>
    %140 = vector.extract_strided_slice %114 {offsets = [48, 0], sizes = [16, 16], strides = [1, 1]} : vector<64x16xf32> to vector<16x16xf32>
    %141 = arith.truncf %140 : vector<16x16xf32> to vector<16x16xbf16>
    %cst_61 = arith.constant dense<0.000000e+00> : vector<16x8xf32>
    %142 = tpu.matmul %141, %102, %cst_61 {dimension_numbers = #tpu.dot_dimension_numbers<[1], [0], [0], [1], [0, 0, 1, 1], [], []>} : vector<16x16xbf16>, vector<16x8xbf16>, vector<16x8xf32> -> vector<16x8xf32>
    %c120 = arith.constant 120 : index
    %c0_62 = arith.constant 0 : index
    %143 = vector.load %arg1[%c120, %c0_62] : memref<245x128xf32, #tpu.memory_space<vmem>>, vector<8x32xf32>
    %144 = arith.truncf %143 : vector<8x32xf32> to vector<8x32xbf16>
    %145 = arith.truncf %142 : vector<16x8xf32> to vector<16x8xbf16>
    %cst_63 = arith.constant dense<0.000000e+00> : vector<16x32xf32>
    %146 = tpu.matmul %145, %144, %cst_63 {dimension_numbers = #tpu.dot_dimension_numbers<[1], [0], [0], [1], [0, 0, 1, 1], [], []>} : vector<16x8xbf16>, vector<8x32xbf16>, vector<16x32xf32> -> vector<16x32xf32>
    %147 = arith.addf %139, %146 : vector<16x32xf32>
    %c224 = arith.constant 224 : index
    %c0_64 = arith.constant 0 : index
    %148 = vector.load %arg1[%c224, %c0_64] : memref<245x128xf32, #tpu.memory_space<vmem>>, vector<1x32xf32>
    %149 = vector.broadcast %148 : vector<1x32xf32> to vector<16x32xf32>
    %150 = arith.addf %147, %149 : vector<16x32xf32>
    %151 = arith.addf %150, %12 : vector<16x32xf32>
    %c226 = arith.constant 226 : index
    %c0_65 = arith.constant 0 : index
    %152 = vector.load %arg1[%c226, %c0_65] : memref<245x128xf32, #tpu.memory_space<vmem>>, vector<1x32xf32>
    %c227 = arith.constant 227 : index
    %c0_66 = arith.constant 0 : index
    %153 = vector.load %arg1[%c227, %c0_66] : memref<245x128xf32, #tpu.memory_space<vmem>>, vector<1x32xf32>
    %cst_67 = arith.constant dense<0.000000e+00> : vector<16xf32>
    %154 = vector.multi_reduction <add>, %151, %cst_67 [1] : vector<16x32xf32> to vector<16xf32>
    %155 = vector.shape_cast %154 : vector<16xf32> to vector<16x1xf32>
    %cst_68 = arith.constant 3.200000e+01 : f32
    %156 = vector.broadcast %cst_68 : f32 to vector<16x1xf32>
    %157 = arith.divf %155, %156 : vector<16x1xf32>
    %158 = vector.broadcast %157 : vector<16x1xf32> to vector<16x32xf32>
    %159 = arith.subf %151, %158 : vector<16x32xf32>
    %160 = arith.mulf %159, %159 : vector<16x32xf32>
    %cst_69 = arith.constant dense<0.000000e+00> : vector<16xf32>
    %161 = vector.multi_reduction <add>, %160, %cst_69 [1] : vector<16x32xf32> to vector<16xf32>
    %162 = vector.shape_cast %161 : vector<16xf32> to vector<16x1xf32>
    %cst_70 = arith.constant 3.200000e+01 : f32
    %163 = vector.broadcast %cst_70 : f32 to vector<16x1xf32>
    %164 = arith.divf %162, %163 : vector<16x1xf32>
    %165 = vector.broadcast %157 : vector<16x1xf32> to vector<16x32xf32>
    %166 = arith.subf %151, %165 : vector<16x32xf32>
    %cst_71 = arith.constant 9.99999974E-6 : f32
    %167 = vector.broadcast %cst_71 : f32 to vector<16x1xf32>
    %168 = arith.addf %164, %167 : vector<16x1xf32>
    %169 = math.rsqrt %168 : vector<16x1xf32>
    %170 = vector.broadcast %169 : vector<16x1xf32> to vector<16x32xf32>
    %171 = arith.mulf %166, %170 : vector<16x32xf32>
    %172 = vector.broadcast %152 : vector<1x32xf32> to vector<16x32xf32>
    %173 = arith.mulf %171, %172 : vector<16x32xf32>
    %174 = vector.broadcast %153 : vector<1x32xf32> to vector<16x32xf32>
    %175 = arith.addf %173, %174 : vector<16x32xf32>
    %c192 = arith.constant 192 : index
    %c0_72 = arith.constant 0 : index
    %176 = vector.load %arg1[%c192, %c0_72] : memref<245x128xf32, #tpu.memory_space<vmem>>, vector<32x64xf32>
    %177 = arith.truncf %176 : vector<32x64xf32> to vector<32x64xbf16>
    %c128 = arith.constant 128 : index
    %c0_73 = arith.constant 0 : index
    %178 = vector.load %arg1[%c128, %c0_73] : memref<245x128xf32, #tpu.memory_space<vmem>>, vector<64x32xf32>
    %179 = arith.truncf %178 : vector<64x32xf32> to vector<64x32xbf16>
    %180 = arith.truncf %175 : vector<16x32xf32> to vector<16x32xbf16>
    %cst_74 = arith.constant dense<0.000000e+00> : vector<16x64xf32>
    %181 = tpu.matmul %180, %177, %cst_74 {dimension_numbers = #tpu.dot_dimension_numbers<[1], [0], [0], [1], [0, 0, 1, 1], [], []>} : vector<16x32xbf16>, vector<32x64xbf16>, vector<16x64xf32> -> vector<16x64xf32>
    %c232 = arith.constant 232 : index
    %c0_75 = arith.constant 0 : index
    %182 = vector.load %arg1[%c232, %c0_75] : memref<245x128xf32, #tpu.memory_space<vmem>>, vector<1x64xf32>
    %183 = vector.broadcast %182 : vector<1x64xf32> to vector<16x64xf32>
    %184 = arith.addf %181, %183 : vector<16x64xf32>
    %cst_76 = arith.constant 0.000000e+00 : f32
    %185 = vector.broadcast %cst_76 : f32 to vector<16x64xf32>
    %186 = arith.maximumf %184, %185 : vector<16x64xf32>
    %187 = arith.truncf %186 : vector<16x64xf32> to vector<16x64xbf16>
    %cst_77 = arith.constant dense<0.000000e+00> : vector<16x32xf32>
    %188 = tpu.matmul %187, %179, %cst_77 {dimension_numbers = #tpu.dot_dimension_numbers<[1], [0], [0], [1], [0, 0, 1, 1], [], []>} : vector<16x64xbf16>, vector<64x32xbf16>, vector<16x32xf32> -> vector<16x32xf32>
    %c225 = arith.constant 225 : index
    %c0_78 = arith.constant 0 : index
    %189 = vector.load %arg1[%c225, %c0_78] : memref<245x128xf32, #tpu.memory_space<vmem>>, vector<1x32xf32>
    %190 = vector.broadcast %189 : vector<1x32xf32> to vector<16x32xf32>
    %191 = arith.addf %188, %190 : vector<16x32xf32>
    %192 = arith.addf %191, %175 : vector<16x32xf32>
    %c228 = arith.constant 228 : index
    %c0_79 = arith.constant 0 : index
    %193 = vector.load %arg1[%c228, %c0_79] : memref<245x128xf32, #tpu.memory_space<vmem>>, vector<1x32xf32>
    %c229 = arith.constant 229 : index
    %c0_80 = arith.constant 0 : index
    %194 = vector.load %arg1[%c229, %c0_80] : memref<245x128xf32, #tpu.memory_space<vmem>>, vector<1x32xf32>
    %cst_81 = arith.constant dense<0.000000e+00> : vector<16xf32>
    %195 = vector.multi_reduction <add>, %192, %cst_81 [1] : vector<16x32xf32> to vector<16xf32>
    %196 = vector.shape_cast %195 : vector<16xf32> to vector<16x1xf32>
    %cst_82 = arith.constant 3.200000e+01 : f32
    %197 = vector.broadcast %cst_82 : f32 to vector<16x1xf32>
    %198 = arith.divf %196, %197 : vector<16x1xf32>
    %199 = vector.broadcast %198 : vector<16x1xf32> to vector<16x32xf32>
    %200 = arith.subf %192, %199 : vector<16x32xf32>
    %201 = arith.mulf %200, %200 : vector<16x32xf32>
    %cst_83 = arith.constant dense<0.000000e+00> : vector<16xf32>
    %202 = vector.multi_reduction <add>, %201, %cst_83 [1] : vector<16x32xf32> to vector<16xf32>
    %203 = vector.shape_cast %202 : vector<16xf32> to vector<16x1xf32>
    %cst_84 = arith.constant 3.200000e+01 : f32
    %204 = vector.broadcast %cst_84 : f32 to vector<16x1xf32>
    %205 = arith.divf %203, %204 : vector<16x1xf32>
    %206 = vector.broadcast %198 : vector<16x1xf32> to vector<16x32xf32>
    %207 = arith.subf %192, %206 : vector<16x32xf32>
    %cst_85 = arith.constant 9.99999974E-6 : f32
    %208 = vector.broadcast %cst_85 : f32 to vector<16x1xf32>
    %209 = arith.addf %205, %208 : vector<16x1xf32>
    %210 = math.rsqrt %209 : vector<16x1xf32>
    %211 = vector.broadcast %210 : vector<16x1xf32> to vector<16x32xf32>
    %212 = arith.mulf %207, %211 : vector<16x32xf32>
    %213 = vector.broadcast %193 : vector<1x32xf32> to vector<16x32xf32>
    %214 = arith.mulf %212, %213 : vector<16x32xf32>
    %215 = vector.broadcast %194 : vector<1x32xf32> to vector<16x32xf32>
    %216 = arith.addf %214, %215 : vector<16x32xf32>
    %c0_86 = arith.constant 0 : index
    %c0_87 = arith.constant 0 : index
    %217 = vector.load %arg2[%c0_86, %c0_87] : memref<16x32xf32, #tpu.memory_space<vmem>>, vector<16x32xf32>
    tpu.vector_store %arg2[%c0_86, %c0_87], %216 {strides = array<i32>} : memref<16x32xf32, #tpu.memory_space<vmem>>, vector<16x32xf32>,
    return
  }
}

</mosaic_0001>

<llo_original>
// kernel: decoder_p_pallas.1
$region0: #{decoder_p_pallas.1}
  #allocation0 [shape = 'u32[]', space=smem, size = 0x4, offset = 0x4, fixed_abs, tag = 'smem constant byte address 0x4 - core index']
  #allocation1 [shape = 'u32[72,128]{1,0:T(1,128)}', space=vmem, size = 0x9000, scoped, tag = 'internal scratch']
  %s0 = inlined_call_operand.vmem [shape: f32[112,128], index: 0, kind: input, shape index: {}]
  %s1 = inlined_call_operand.vmem [shape: f32[245,128], index: 1, kind: input, shape index: {}]
  %s2 = inlined_call_operand.hbm [shape: f32[16,32], index: 2, kind: output, shape index: {}]
  %s3 = sld [smem:[#allocation0]]
  $region18: #{decoder_p_pallas.1} parent=0
    _
  %s5 = ssub.s32 1, %s3
  %s6 = scalar_select 0, %s5, %s3
  $region1: #{decoder_p_pallas.1} parent=0
    #allocation2 [shape = 'u8[8192]{0}', space=vmem, size = 0x2000, scoped, tag = 'output window, operand 0, single buffered']
    #allocation3 [shape = 's32[1]{0}', space=sflag, size = 0x4, scoped, tag = 'scoped memory for decoder_p_pallas.1']
    %7 = vsyncpa [#allocation3], 0
    // Predicated region
    $region2: #{decoder_p_pallas.1} parent=1 // pred_check
      _
    $region3: #{decoder_p_pallas.1} parent=1 // pred_check_branch
      %9 = sbr.rel (0) target = $region5
    $region4: #{decoder_p_pallas.1} parent=1 // pred_region
      _
    $region5: #{decoder_p_pallas.1} parent=1 // pred_fallthru
      _
    // Predicated region
    $region6: #{decoder_p_pallas.1} parent=1 // pred_check
      _
    $region7: #{decoder_p_pallas.1} parent=1 // pred_check_branch
      %11 = sbr.rel (0) target = $region9
    $region8: #{decoder_p_pallas.1} parent=1 // pred_region
      _
    $region9: #{decoder_p_pallas.1} parent=1 // pred_fallthru
      _
    %v13 = vld [vmem:[%s0] sm:$0xff]
    %v14 = vld [vmem:[%s0 + $0x8] sm:$0xff]
    %v15 = vld [vmem:[%s0 + $0x10] sm:$0xff]
    %v16 = vld [vmem:[%s0 + $0x18] sm:$0xff]
    %v17 = vld [vmem:[%s0 + $0x20] sm:$0xff]
    %v18 = vld [vmem:[%s0 + $0x28] sm:$0xff]
    %v19 = vld [vmem:[%s0 + $0x30] sm:$0xff]
    %v20 = vld [vmem:[%s0 + $0x38] sm:$0xff]
    %v21 = vld [vmem:[%s0 + $0x40] sm:$0xff]
    %v22 = vld [vmem:[%s0 + $0x48] sm:$0xff]
    %v23 = vld [vmem:[%s0 + $0x50] sm:$0xff]
    %v24 = vld [vmem:[%s0 + $0x58] sm:$0xff]
    %v25 = vld [vmem:[%s0 + $0x60] sm:$0xff]
    %v26 = vld [vmem:[%s0 + $0x68] sm:$0xff]
    %v27 = vld [vmem:[%s1 + $0xe6] sm:$0x1]
    %29 = vset.pattern.permute.xlu0 0
    %30 = vperm.xlu0 %29, %v17
    %v31 = vpop.permute.xlu0 %30
    %34 = vset.pattern.permute.xlu0 0
    %35 = vperm.xlu0 %34, %v18
    %v36 = vpop.permute.xlu0 %35
    %v38 = vperm.slane %v27, 0
    %v39 = vmul.f32 %v31, %v38
    %v40 = vmul.f32 %v36, %v38
    %v41 = vld [vmem:[%s1 + $0xe7] sm:$0x1]
    %v42 = vperm.slane %v41, 0
    %v43 = vadd.f32 %v39, %v42
    %v44 = vadd.f32 %v40, %v42
    %v45 = vand.u32 2147483647, %v43
    %vm46 = vcmp.le.f32.partialorder %v45, 0.7853982
    %vm47 = vcmp.lt.s32.totalorder %v43, 0
    %v48 = vand.u32 %v43, 2139095040
    %v49 = vshrl.u32 %v48, 23
    %v50 = vsub.s32 %v49, 127
    %v51 = vand.u32 2147483647, %v43
    %v52 = vand.u32 %v51, 8388607
    %v53 = vor.u32 %v52, 8388608
    %v54 = vsub.s32 0, %v53
    %v55 = vadd.s32 %v50, 1
    %vm56 = vcmp.gt.s32.totalorder %v55, 0
    %v57 = vsel %vm56, %v55, 0
    %v58 = vshrl.u32 %v57, 5
    %v59 = vand.u32 %v57, 31
    %v60 = vsub.s32 32, %v59
    %v61 = vshrl.u32 683565275, %v60
    %v62 = vshll.u32 683565275, %v59
    %v63 = vshrl.u32 2475754826, %v60
    %v64 = vor.u32 %v62, %v63
    %v65 = vshll.u32 2475754826, %v59
    %v66 = vshrl.u32 2131351028, %v60
    %v67 = vor.u32 %v65, %v66
    %v68 = vshll.u32 2131351028, %v59
    %v69 = vshrl.u32 2102212464, %v60
    %v70 = vor.u32 %v68, %v69
    %v71 = vshll.u32 2102212464, %v59
    %v72 = vshrl.u32 920167782, %v60
    %v73 = vor.u32 %v71, %v72
    %v74 = vshll.u32 920167782, %v59
    %v75 = vshrl.u32 1326507024, %v60
    %v76 = vor.u32 %v74, %v75
    %vm77 = vcmp.lt.s32.totalorder %v58, 1
    %vm78 = vcmp.lt.s32.totalorder %v58, 2
    %vm79 = vcmp.lt.s32.totalorder %v58, 3
    %vm80 = vcmp.lt.s32.totalorder %v58, 4
    %v81 = vsel %vm77, %v61, %v64
    %v82 = vsel %vm80, %v70, 2102212464
    %v83 = vsel %vm79, %v67, %v82
    %v84 = vsel %vm78, %v81, %v83
    %v85 = vsel %vm77, %v64, %v67
    %v86 = vsel %vm80, %v73, 920167782
    %v87 = vsel %vm79, %v70, %v86
    %v88 = vsel %vm78, %v85, %v87
    %v89 = vsel %vm77, %v67, %v70
    %v90 = vsel %vm80, %v76, 1326507024
    %v91 = vsel %vm79, %v73, %v90
    %v92 = vsel %vm78, %v89, %v91
    %v93 = vshll.u32 %v53, 8
    %v94 = vand.u32 %v93, 65535
    %v95 = vshrl.u32 %v93, 16
    %v96 = vand.u32 %v92, 65535
    %v97 = vshrl.u32 %v92, 16
    %v98 = vmul.u32 %v94, %v96
    %v99 = vmul.u32 %v94, %v97
    %v100 = vmul.u32 %v95, %v96
    %v101 = vmul.u32 %v95, %v97
    %v102 = vshll.u32 %v99, 16
    %v103 = vshrl.u32 %v99, 16
    %v104 = vshll.u32 %v100, 16
    %v105 = vshrl.u32 %v100, 16
    %vm106 = vc.u32 %v98, %v102
    %v107 = vsel %vm106, 1, 0
    %v108 = vadd.s32 %v98, %v102
    %v109 = vadd.s32 %v101, %v107
    %vm110 = vc.u32 %v108, %v104
    %v111 = vsel %vm110, 1, 0
    %v112 = vadd.s32 %v108, %v104
    %v113 = vadd.s32 %v109, %v111
    %v114 = vadd.s32 %v113, %v103
    %v115 = vadd.s32 %v114, %v105
    %v116 = vand.u32 %v93, 65535
    %v117 = vshrl.u32 %v93, 16
    %v118 = vand.u32 %v88, 65535
    %v119 = vshrl.u32 %v88, 16
    %v120 = vmul.u32 %v116, %v118
    %v121 = vmul.u32 %v116, %v119
    %v122 = vmul.u32 %v117, %v118
    %v123 = vmul.u32 %v117, %v119
    %v124 = vshll.u32 %v121, 16
    %v125 = vshrl.u32 %v121, 16
    %v126 = vshll.u32 %v122, 16
    %v127 = vshrl.u32 %v122, 16
    %vm128 = vc.u32 %v120, %v124
    %v129 = vsel %vm128, 1, 0
    %v130 = vadd.s32 %v120, %v124
    %v131 = vadd.s32 %v123, %v129
    %vm132 = vc.u32 %v130, %v126
    %v133 = vsel %vm132, 1, 0
    %v134 = vadd.s32 %v130, %v126
    %v135 = vadd.s32 %v131, %v133
    %v136 = vadd.s32 %v135, %v125
    %v137 = vadd.s32 %v136, %v127
    %v138 = vmul.u32 %v93, %v84
    %v139 = vadd.s32 %v115, %v134
    %vm140 = vc.u32 %v115, %v134
    %v141 = vadd.s32 %v137, 1
    %v142 = vsel %vm140, %v141, %v137
    %v143 = vadd.s32 %v138, %v142
    %v144 = vadd.s32 %v143, 536870912
    %v145 = vshrl.u32 %v144, 30
    %v146 = vshll.u32 %v145, 30
    %v147 = vsub.s32 %v143, %v146
    %vm148 = vcmp.lt.s32.totalorder %v147, 0
    %v149 = vsub.s32 0, %v147
    %v150 = vsel %vm148, %v149, %v147
    %v151 = vclz %v150
    %v152 = vsub.s32 %v151, 2
    %vm153 = vcmp.gt.s32.totalorder 0, %v152
    %v154 = vsel %vm153, 0, %v152
    %v155 = vsub.s32 32, %v154
    %v156 = vshll.u32 %v147, %v154
    %v157 = vshrl.u32 %v139, %v155
    %v158 = vor.u32 %v156, %v157
    %v159 = vsub.s32 4294967266, %v154
    %v160 = vadd.s32 %v159, 127
    %v161 = vshll.u32 %v160, 23
    %v162 = vor.u32 4788187, %v161
    %v163 = vand.u32 2147483647, %v162
    %v165 = vcvt.s32.f32 %v158
    %v166 = vmul.f32 %v165, %v163
    %v167 = vxor.u32 %v166, 2147483648
    %v168 = vsel %vm47, %v167, %v166
    %v169 = vsub.s32 4, %v145
    %v170 = vsel %vm47, %v169, %v145
    %v171 = vsel %vm46, %v43, %v168
    %v172 = vsel %vm46, 0, %v170
    %v173 = vmul.f32 %v171, %v171
    %v174 = vmul.f32 %v173, -0.001358992
    %v175 = vadd.f32 %v174, 0.041655596
    %v176 = vmul.f32 %v173, %v175
    %v177 = vadd.f32 %v176, -0.4999988
    %v178 = vmul.f32 %v173, %v177
    %v179 = vadd.f32 1.0, %v178
    %v180 = vmul.f32 %v171, %v171
    %v181 = vmul.f32 %v180, -0.00019511016
    %v182 = vadd.f32 %v181, 0.008332121
    %v183 = vmul.f32 %v180, %v182
    %v184 = vadd.f32 %v183, -0.16666654
    %v185 = vmul.f32 %v180, %v184
    %v186 = vadd.f32 %v185, 1.0
    %v187 = vmul.f32 %v186, %v171
    %vm188 = vweird.f32 %v43
    %v189 = vadd.s32 %v172, 3
    %v190 = vand.u32 %v189, 3
    %vm191 = vcmp.lt.s32.totalorder %v190, 2
    %vm192 = vcmp.eq.s32.totalorder %v190, 0
    %v193 = vxor.u32 %v187, 2147483648
    %v194 = vsel %vm192, %v179, %v193
    %vm195 = vcmp.eq.s32.totalorder %v190, 2
    %v196 = vxor.u32 %v179, 2147483648
    %v197 = vsel %vm195, %v196, %v187
    %v198 = vsel %vm191, %v194, %v197
    %v199 = vsel %vm188, nan, %v198
    %v200 = vand.u32 2147483647, %v44
    %vm201 = vcmp.le.f32.partialorder %v200, 0.7853982
    %vm202 = vcmp.lt.s32.totalorder %v44, 0
    %v203 = vand.u32 %v44, 2139095040
    %v204 = vshrl.u32 %v203, 23
    %v205 = vsub.s32 %v204, 127
    %v206 = vand.u32 2147483647, %v44
    %v207 = vand.u32 %v206, 8388607
    %v208 = vor.u32 %v207, 8388608
    %v209 = vsub.s32 0, %v208
    %v210 = vadd.s32 %v205, 1
    %vm211 = vcmp.gt.s32.totalorder %v210, 0
    %v212 = vsel %vm211, %v210, 0
    %v213 = vshrl.u32 %v212, 5
    %v214 = vand.u32 %v212, 31
    %v215 = vsub.s32 32, %v214
    %v216 = vshrl.u32 683565275, %v215
    %v217 = vshll.u32 683565275, %v214
    %v218 = vshrl.u32 2475754826, %v215
    %v219 = vor.u32 %v217, %v218
    %v220 = vshll.u32 2475754826, %v214
    %v221 = vshrl.u32 2131351028, %v215
    %v222 = vor.u32 %v220, %v221
    %v223 = vshll.u32 2131351028, %v214
    %v224 = vshrl.u32 2102212464, %v215
    %v225 = vor.u32 %v223, %v224
    %v226 = vshll.u32 2102212464, %v214
    %v227 = vshrl.u32 920167782, %v215
    %v228 = vor.u32 %v226, %v227
    %v229 = vshll.u32 920167782, %v214
    %v230 = vshrl.u32 1326507024, %v215
    %v231 = vor.u32 %v229, %v230
    %vm232 = vcmp.lt.s32.totalorder %v213, 1
    %vm233 = vcmp.lt.s32.totalorder %v213, 2
    %vm234 = vcmp.lt.s32.totalorder %v213, 3
    %vm235 = vcmp.lt.s32.totalorder %v213, 4
    %v236 = vsel %vm232, %v216, %v219
    %v237 = vsel %vm235, %v225, 2102212464
    %v238 = vsel %vm234, %v222, %v237
    %v239 = vsel %vm233, %v236, %v238
    %v240 = vsel %vm232, %v219, %v222
    %v241 = vsel %vm235, %v228, 920167782
    %v242 = vsel %vm234, %v225, %v241
    %v243 = vsel %vm233, %v240, %v242
    %v244 = vsel %vm232, %v222, %v225
    %v245 = vsel %vm235, %v231, 1326507024
    %v246 = vsel %vm234, %v228, %v245
    %v247 = vsel %vm233, %v244, %v246
    %v248 = vshll.u32 %v208, 8
    %v249 = vand.u32 %v248, 65535
    %v250 = vshrl.u32 %v248, 16
    %v251 = vand.u32 %v247, 65535
    %v252 = vshrl.u32 %v247, 16
    %v253 = vmul.u32 %v249, %v251
    %v254 = vmul.u32 %v249, %v252
    %v255 = vmul.u32 %v250, %v251
    %v256 = vmul.u32 %v250, %v252
    %v257 = vshll.u32 %v254, 16
    %v258 = vshrl.u32 %v254, 16
    %v259 = vshll.u32 %v255, 16
    %v260 = vshrl.u32 %v255, 16
    %vm261 = vc.u32 %v253, %v257
    %v262 = vsel %vm261, 1, 0
    %v263 = vadd.s32 %v253, %v257
    %v264 = vadd.s32 %v256, %v262
    %vm265 = vc.u32 %v263, %v259
    %v266 = vsel %vm265, 1, 0
    %v267 = vadd.s32 %v263, %v259
    %v268 = vadd.s32 %v264, %v266
    %v269 = vadd.s32 %v268, %v258
    %v270 = vadd.s32 %v269, %v260
    %v271 = vand.u32 %v248, 65535
    %v272 = vshrl.u32 %v248, 16
    %v273 = vand.u32 %v243, 65535
    %v274 = vshrl.u32 %v243, 16
    %v275 = vmul.u32 %v271, %v273
    %v276 = vmul.u32 %v271, %v274
    %v277 = vmul.u32 %v272, %v273
    %v278 = vmul.u32 %v272, %v274
    %v279 = vshll.u32 %v276, 16
    %v280 = vshrl.u32 %v276, 16
    %v281 = vshll.u32 %v277, 16
    %v282 = vshrl.u32 %v277, 16
    %vm283 = vc.u32 %v275, %v279
    %v284 = vsel %vm283, 1, 0
    %v285 = vadd.s32 %v275, %v279
    %v286 = vadd.s32 %v278, %v284
    %vm287 = vc.u32 %v285, %v281
    %v288 = vsel %vm287, 1, 0
    %v289 = vadd.s32 %v285, %v281
    %v290 = vadd.s32 %v286, %v288
    %v291 = vadd.s32 %v290, %v280
    %v292 = vadd.s32 %v291, %v282
    %v293 = vmul.u32 %v248, %v239
    %v294 = vadd.s32 %v270, %v289
    %vm295 = vc.u32 %v270, %v289
    %v296 = vadd.s32 %v292, 1
    %v297 = vsel %vm295, %v296, %v292
    %v298 = vadd.s32 %v293, %v297
    %v299 = vadd.s32 %v298, 536870912
    %v300 = vshrl.u32 %v299, 30
    %v301 = vshll.u32 %v300, 30
    %v302 = vsub.s32 %v298, %v301
    %vm303 = vcmp.lt.s32.totalorder %v302, 0
    %v304 = vsub.s32 0, %v302
    %v305 = vsel %vm303, %v304, %v302
    %v306 = vclz %v305
    %v307 = vsub.s32 %v306, 2
    %vm308 = vcmp.gt.s32.totalorder 0, %v307
    %v309 = vsel %vm308, 0, %v307
    %v310 = vsub.s32 32, %v309
    %v311 = vshll.u32 %v302, %v309
    %v312 = vshrl.u32 %v294, %v310
    %v313 = vor.u32 %v311, %v312
    %v314 = vsub.s32 4294967266, %v309
    %v315 = vadd.s32 %v314, 127
    %v316 = vshll.u32 %v315, 23
    %v317 = vor.u32 4788187, %v316
    %v318 = vand.u32 2147483647, %v317
    %v320 = vcvt.s32.f32 %v313
    %v321 = vmul.f32 %v320, %v318
    %v322 = vxor.u32 %v321, 2147483648
    %v323 = vsel %vm202, %v322, %v321
    %v324 = vsub.s32 4, %v300
    %v325 = vsel %vm202, %v324, %v300
    %v326 = vsel %vm201, %v44, %v323
    %v327 = vsel %vm201, 0, %v325
    %v328 = vmul.f32 %v326, %v326
    %v329 = vmul.f32 %v328, -0.001358992
    %v330 = vadd.f32 %v329, 0.041655596
    %v331 = vmul.f32 %v328, %v330
    %v332 = vadd.f32 %v331, -0.4999988
    %v333 = vmul.f32 %v328, %v332
    %v334 = vadd.f32 1.0, %v333
    %v335 = vmul.f32 %v326, %v326
    %v336 = vmul.f32 %v335, -0.00019511016
    %v337 = vadd.f32 %v336, 0.008332121
    %v338 = vmul.f32 %v335, %v337
    %v339 = vadd.f32 %v338, -0.16666654
    %v340 = vmul.f32 %v335, %v339
    %v341 = vadd.f32 %v340, 1.0
    %v342 = vmul.f32 %v341, %v326
    %vm343 = vweird.f32 %v44
    %v344 = vadd.s32 %v327, 3
    %v345 = vand.u32 %v344, 3
    %vm346 = vcmp.lt.s32.totalorder %v345, 2
    %vm347 = vcmp.eq.s32.totalorder %v345, 0
    %v348 = vxor.u32 %v342, 2147483648
    %v349 = vsel %vm347, %v334, %v348
    %vm350 = vcmp.eq.s32.totalorder %v345, 2
    %v351 = vxor.u32 %v334, 2147483648
    %v352 = vsel %vm350, %v351, %v342
    %v353 = vsel %vm346, %v349, %v352
    %v354 = vsel %vm343, nan, %v353
    %v355 = vadd.f32 %v13, %v199
    %v356 = vadd.f32 %v14, %v354
    %v357 = vpack.c.bf16 %v356, %v355
    %v358 = vpack.c.bf16 %v16, %v15
    %v359 = vld [vmem:[%s1] sm:$0xff]
    %v360 = vpack.c.bf16 %v359, %v359
    %v361 = vld [vmem:[%s1 + $0x20] sm:$0xff]
    %v362 = vpack.c.bf16 %v361, %v361
    %v363 = vld [vmem:[%s1 + $0x40] sm:$0xff]
    %v364 = vpack.c.bf16 %v363, %v363
    %v365 = vld [vmem:[%s1 + $0xe9] sm:$0x1]
    %v366 = vperm.slane %v365, 0
    %vm367 = vcmask 261120
    %v369 = vsel %vm367, %v357, 0
    %v372 = vsel %vm367, %v360, 0
    %374 = vmatpush.bf16.xpose.msra.mxu0 0
    %375 = vmatpush.bf16.xpose.msra.mxu0 0
    %376 = vmatpush.bf16.xpose.msra.mxu0 0
    %377 = vmatpush.bf16.xpose.msra.mxu0 0
    %378 = vmatpush.bf16.xpose.msra.mxu0 0
    %379 = vmatpush.bf16.xpose.msra.mxu0 0
    %380 = vmatpush.bf16.xpose.msra.mxu0 0
    %381 = vmatpush.bf16.xpose.msra.mxu0 %v372
    %382 = vmatmul.bf16.gmra.mxu0 %v369
    %v383 = vpop.f32.mrf.mxu0
    %v384 = vadd.f32 %v366, %v383
    %v385 = vpop.f32.mrf.mxu0
    %v386 = vadd.f32 %v366, %v385
    %387 = vdwg.mxu0
    %v388 = vld [vmem:[%s1 + $0xed] sm:$0x1]
    %v389 = vperm.slane %v388, 0
    %v391 = vsel %vm367, %v358, 0
    %v394 = vsel %vm367, %v362, 0
    %396 = vmatpush.bf16.xpose.msra.mxu0 0
    %397 = vmatpush.bf16.xpose.msra.mxu0 0
    %398 = vmatpush.bf16.xpose.msra.mxu0 0
    %399 = vmatpush.bf16.xpose.msra.mxu0 0
    %400 = vmatpush.bf16.xpose.msra.mxu0 0
    %401 = vmatpush.bf16.xpose.msra.mxu0 0
    %402 = vmatpush.bf16.xpose.msra.mxu0 0
    %403 = vmatpush.bf16.xpose.msra.mxu0 %v394
    %404 = vmatmul.bf16.gmra.mxu0 %v391
    %v405 = vpop.f32.mrf.mxu0
    %v406 = vadd.f32 %v389, %v405
    %v407 = vpop.f32.mrf.mxu0
    %v408 = vadd.f32 %v389, %v407
    %409 = vdwg.mxu0
    %v410 = vld [vmem:[%s1 + $0xf1] sm:$0x1]
    %v411 = vperm.slane %v410, 0
    %v413 = vsel %vm367, %v364, 0
    %415 = vmatpush.bf16.xpose.msra.mxu0 0
    %416 = vmatpush.bf16.xpose.msra.mxu0 0
    %417 = vmatpush.bf16.xpose.msra.mxu0 0
    %418 = vmatpush.bf16.xpose.msra.mxu0 0
    %419 = vmatpush.bf16.xpose.msra.mxu0 0
    %420 = vmatpush.bf16.xpose.msra.mxu0 0
    %421 = vmatpush.bf16.xpose.msra.mxu0 0
    %422 = vmatpush.bf16.xpose.msra.mxu0 %v413
    %423 = vmatmul.bf16.gmra.mxu0 %v391
    %v424 = vpop.f32.mrf.mxu0
    %v425 = vadd.f32 %v411, %v424
    %v426 = vpop.f32.mrf.mxu0
    %v427 = vadd.f32 %v411, %v426
    %428 = vdwg.mxu0
    %v429 = vpack.c.bf16 %v386, %v384
    %v430 = vpack.c.bf16 %v408, %v406
    %vm431 = vcmask 64512
    %v433 = vsel %vm431, %v429, 0
    %v436 = vsel %vm431, %v430, 0
    %438 = vmatpush.bf16.xpose.msra.mxu0 0
    %439 = vmatpush.bf16.xpose.msra.mxu0 0
    %440 = vmatpush.bf16.xpose.msra.mxu0 0
    %441 = vmatpush.bf16.xpose.msra.mxu0 0
    %442 = vmatpush.bf16.xpose.msra.mxu0 0
    %443 = vmatpush.bf16.xpose.msra.mxu0 0
    %444 = vmatpush.bf16.xpose.msra.mxu0 0
    %445 = vmatpush.bf16.xpose.msra.mxu0 %v436
    %446 = vmatmul.bf16.gmra.mxu0 %v433
    %v447 = vpop.f32.mrf.mxu0
    %v448 = vadd.f32 0.0, %v447
    %v449 = vpop.f32.mrf.mxu0
    %v450 = vadd.f32 0.0, %v449
    %451 = vdwg.mxu0
    %v452 = vpack.c.bf16 %v427, %v425
    %v453 = vld [vmem:[%s1 + $0x8] sm:$0xff]
    %v454 = vpack.c.bf16 %v453, %v453
    %v455 = vld [vmem:[%s1 + $0x28] sm:$0xff]
    %v456 = vpack.c.bf16 %v455, %v455
    %v457 = vld [vmem:[%s1 + $0x48] sm:$0xff]
    %v458 = vpack.c.bf16 %v457, %v457
    %v459 = vld [vmem:[%s1 + $0xea] sm:$0x1]
    %v460 = vperm.slane %v459, 0
    %v462 = vsel %vm367, %v454, 0
    %464 = vmatpush.bf16.xpose.msra.mxu0 0
    %465 = vmatpush.bf16.xpose.msra.mxu0 0
    %466 = vmatpush.bf16.xpose.msra.mxu0 0
    %467 = vmatpush.bf16.xpose.msra.mxu0 0
    %468 = vmatpush.bf16.xpose.msra.mxu0 0
    %469 = vmatpush.bf16.xpose.msra.mxu0 0
    %470 = vmatpush.bf16.xpose.msra.mxu0 0
    %471 = vmatpush.bf16.xpose.msra.mxu0 %v462
    %472 = vmatmul.bf16.gmra.mxu0 %v369
    %v473 = vpop.f32.mrf.mxu0
    %v474 = vadd.f32 %v460, %v473
    %v475 = vpop.f32.mrf.mxu0
    %v476 = vadd.f32 %v460, %v475
    %477 = vdwg.mxu0
    %v478 = vld [vmem:[%s1 + $0xee] sm:$0x1]
    %v479 = vperm.slane %v478, 0
    %v481 = vsel %vm367, %v456, 0
    %483 = vmatpush.bf16.xpose.msra.mxu0 0
    %484 = vmatpush.bf16.xpose.msra.mxu0 0
    %485 = vmatpush.bf16.xpose.msra.mxu0 0
    %486 = vmatpush.bf16.xpose.msra.mxu0 0
    %487 = vmatpush.bf16.xpose.msra.mxu0 0
    %488 = vmatpush.bf16.xpose.msra.mxu0 0
    %489 = vmatpush.bf16.xpose.msra.mxu0 0
    %490 = vmatpush.bf16.xpose.msra.mxu0 %v481
    %491 = vmatmul.bf16.gmra.mxu0 %v391
    %v492 = vpop.f32.mrf.mxu0
    %v493 = vadd.f32 %v479, %v492
    %v494 = vpop.f32.mrf.mxu0
    %v495 = vadd.f32 %v479, %v494
    %496 = vdwg.mxu0
    %v497 = vld [vmem:[%s1 + $0xf2] sm:$0x1]
    %v498 = vperm.slane %v497, 0
    %v500 = vsel %vm367, %v458, 0
    %502 = vmatpush.bf16.xpose.msra.mxu0 0
    %503 = vmatpush.bf16.xpose.msra.mxu0 0
    %504 = vmatpush.bf16.xpose.msra.mxu0 0
    %505 = vmatpush.bf16.xpose.msra.mxu0 0
    %506 = vmatpush.bf16.xpose.msra.mxu0 0
    %507 = vmatpush.bf16.xpose.msra.mxu0 0
    %508 = vmatpush.bf16.xpose.msra.mxu0 0
    %509 = vmatpush.bf16.xpose.msra.mxu0 %v500
    %510 = vmatmul.bf16.gmra.mxu0 %v391
    %v511 = vpop.f32.mrf.mxu0
    %v512 = vadd.f32 %v498, %v511
    %v513 = vpop.f32.mrf.mxu0
    %v514 = vadd.f32 %v498, %v513
    %515 = vdwg.mxu0
    %v516 = vpack.c.bf16 %v476, %v474
    %v517 = vpack.c.bf16 %v495, %v493
    %v519 = vsel %vm431, %v516, 0
    %v522 = vsel %vm431, %v517, 0
    %524 = vmatpush.bf16.xpose.msra.mxu0 0
    %525 = vmatpush.bf16.xpose.msra.mxu0 0
    %526 = vmatpush.bf16.xpose.msra.mxu0 0
    %527 = vmatpush.bf16.xpose.msra.mxu0 0
    %528 = vmatpush.bf16.xpose.msra.mxu0 0
    %529 = vmatpush.bf16.xpose.msra.mxu0 0
    %530 = vmatpush.bf16.xpose.msra.mxu0 0
    %531 = vmatpush.bf16.xpose.msra.mxu0 %v522
    %532 = vmatmul.bf16.gmra.mxu0 %v519
    %v533 = vpop.f32.mrf.mxu0
    %v534 = vadd.f32 0.0, %v533
    %v535 = vpop.f32.mrf.mxu0
    %v536 = vadd.f32 0.0, %v535
    %537 = vdwg.mxu0
    %v538 = vpack.c.bf16 %v514, %v512
    %v539 = vld [vmem:[%s1 + $0x10] sm:$0xff]
    %v540 = vpack.c.bf16 %v539, %v539
    %v541 = vld [vmem:[%s1 + $0x30] sm:$0xff]
    %v542 = vpack.c.bf16 %v541, %v541
    %v543 = vld [vmem:[%s1 + $0x50] sm:$0xff]
    %v544 = vpack.c.bf16 %v543, %v543
    %v545 = vld [vmem:[%s1 + $0xeb] sm:$0x1]
    %v546 = vperm.slane %v545, 0
    %v548 = vsel %vm367, %v540, 0
    %550 = vmatpush.bf16.xpose.msra.mxu0 0
    %551 = vmatpush.bf16.xpose.msra.mxu0 0
    %552 = vmatpush.bf16.xpose.msra.mxu0 0
    %553 = vmatpush.bf16.xpose.msra.mxu0 0
    %554 = vmatpush.bf16.xpose.msra.mxu0 0
    %555 = vmatpush.bf16.xpose.msra.mxu0 0
    %556 = vmatpush.bf16.xpose.msra.mxu0 0
    %557 = vmatpush.bf16.xpose.msra.mxu0 %v548
    %558 = vmatmul.bf16.gmra.mxu0 %v369
    %v559 = vpop.f32.mrf.mxu0
    %v560 = vadd.f32 %v546, %v559
    %v561 = vpop.f32.mrf.mxu0
    %v562 = vadd.f32 %v546, %v561
    %563 = vdwg.mxu0
    %v564 = vld [vmem:[%s1 + $0xef] sm:$0x1]
    %v565 = vperm.slane %v564, 0
    %v567 = vsel %vm367, %v542, 0
    %569 = vmatpush.bf16.xpose.msra.mxu0 0
    %570 = vmatpush.bf16.xpose.msra.mxu0 0
    %571 = vmatpush.bf16.xpose.msra.mxu0 0
    %572 = vmatpush.bf16.xpose.msra.mxu0 0
    %573 = vmatpush.bf16.xpose.msra.mxu0 0
    %574 = vmatpush.bf16.xpose.msra.mxu0 0
    %575 = vmatpush.bf16.xpose.msra.mxu0 0
    %576 = vmatpush.bf16.xpose.msra.mxu0 %v567
    %577 = vmatmul.bf16.gmra.mxu0 %v391
    %v578 = vpop.f32.mrf.mxu0
    %v579 = vadd.f32 %v565, %v578
    %v580 = vpop.f32.mrf.mxu0
    %v581 = vadd.f32 %v565, %v580
    %582 = vdwg.mxu0
    %v583 = vld [vmem:[%s1 + $0xf3] sm:$0x1]
    %v584 = vperm.slane %v583, 0
    %v586 = vsel %vm367, %v544, 0
    %588 = vmatpush.bf16.xpose.msra.mxu0 0
    %589 = vmatpush.bf16.xpose.msra.mxu0 0
    %590 = vmatpush.bf16.xpose.msra.mxu0 0
    %591 = vmatpush.bf16.xpose.msra.mxu0 0
    %592 = vmatpush.bf16.xpose.msra.mxu0 0
    %593 = vmatpush.bf16.xpose.msra.mxu0 0
    %594 = vmatpush.bf16.xpose.msra.mxu0 0
    %595 = vmatpush.bf16.xpose.msra.mxu0 %v586
    %596 = vmatmul.bf16.gmra.mxu0 %v391
    %v597 = vpop.f32.mrf.mxu0
    %v598 = vadd.f32 %v584, %v597
    %v599 = vpop.f32.mrf.mxu0
    %v600 = vadd.f32 %v584, %v599
    %601 = vdwg.mxu0
    %v602 = vpack.c.bf16 %v562, %v560
    %v603 = vpack.c.bf16 %v581, %v579
    %v605 = vsel %vm431, %v602, 0
    %v608 = vsel %vm431, %v603, 0
    %610 = vmatpush.bf16.xpose.msra.mxu0 0
    %611 = vmatpush.bf16.xpose.msra.mxu0 0
    %612 = vmatpush.bf16.xpose.msra.mxu0 0
    %613 = vmatpush.bf16.xpose.msra.mxu0 0
    %614 = vmatpush.bf16.xpose.msra.mxu0 0
    %615 = vmatpush.bf16.xpose.msra.mxu0 0
    %616 = vmatpush.bf16.xpose.msra.mxu0 0
    %617 = vmatpush.bf16.xpose.msra.mxu0 %v608
    %618 = vmatmul.bf16.gmra.mxu0 %v605
    %v619 = vpop.f32.mrf.mxu0
    %v620 = vadd.f32 0.0, %v619
    %v621 = vpop.f32.mrf.mxu0
    %v622 = vadd.f32 0.0, %v621
    %623 = vdwg.mxu0
    %v624 = vpack.c.bf16 %v600, %v598
    %v625 = vld [vmem:[%s1 + $0x18] sm:$0xff]
    %v626 = vpack.c.bf16 %v625, %v625
    %v627 = vld [vmem:[%s1 + $0x38] sm:$0xff]
    %v628 = vpack.c.bf16 %v627, %v627
    %v629 = vld [vmem:[%s1 + $0x58] sm:$0xff]
    %v630 = vpack.c.bf16 %v629, %v629
    %v631 = vld [vmem:[%s1 + $0xec] sm:$0x1]
    %v632 = vperm.slane %v631, 0
    %v634 = vsel %vm367, %v626, 0
    %636 = vmatpush.bf16.xpose.msra.mxu0 0
    %637 = vmatpush.bf16.xpose.msra.mxu0 0
    %638 = vmatpush.bf16.xpose.msra.mxu0 0
    %639 = vmatpush.bf16.xpose.msra.mxu0 0
    %640 = vmatpush.bf16.xpose.msra.mxu0 0
    %641 = vmatpush.bf16.xpose.msra.mxu0 0
    %642 = vmatpush.bf16.xpose.msra.mxu0 0
    %643 = vmatpush.bf16.xpose.msra.mxu0 %v634
    %644 = vmatmul.bf16.gmra.mxu0 %v369
    %v645 = vpop.f32.mrf.mxu0
    %v646 = vadd.f32 %v632, %v645
    %v647 = vpop.f32.mrf.mxu0
    %v648 = vadd.f32 %v632, %v647
    %649 = vdwg.mxu0
    %v650 = vld [vmem:[%s1 + $0xf0] sm:$0x1]
    %v651 = vperm.slane %v650, 0
    %v653 = vsel %vm367, %v628, 0
    %655 = vmatpush.bf16.xpose.msra.mxu0 0
    %656 = vmatpush.bf16.xpose.msra.mxu0 0
    %657 = vmatpush.bf16.xpose.msra.mxu0 0
    %658 = vmatpush.bf16.xpose.msra.mxu0 0
    %659 = vmatpush.bf16.xpose.msra.mxu0 0
    %660 = vmatpush.bf16.xpose.msra.mxu0 0
    %661 = vmatpush.bf16.xpose.msra.mxu0 0
    %662 = vmatpush.bf16.xpose.msra.mxu0 %v653
    %663 = vmatmul.bf16.gmra.mxu0 %v391
    %v664 = vpop.f32.mrf.mxu0
    %v665 = vadd.f32 %v651, %v664
    %v666 = vpop.f32.mrf.mxu0
    %v667 = vadd.f32 %v651, %v666
    %668 = vdwg.mxu0
    %v669 = vld [vmem:[%s1 + $0xf4] sm:$0x1]
    %v670 = vperm.slane %v669, 0
    %v672 = vsel %vm367, %v630, 0
    %674 = vmatpush.bf16.xpose.msra.mxu0 0
    %675 = vmatpush.bf16.xpose.msra.mxu0 0
    %676 = vmatpush.bf16.xpose.msra.mxu0 0
    %677 = vmatpush.bf16.xpose.msra.mxu0 0
    %678 = vmatpush.bf16.xpose.msra.mxu0 0
    %679 = vmatpush.bf16.xpose.msra.mxu0 0
    %680 = vmatpush.bf16.xpose.msra.mxu0 0
    %681 = vmatpush.bf16.xpose.msra.mxu0 %v672
    %682 = vmatmul.bf16.gmra.mxu0 %v391
    %v683 = vpop.f32.mrf.mxu0
    %v684 = vadd.f32 %v670, %v683
    %v685 = vpop.f32.mrf.mxu0
    %v686 = vadd.f32 %v670, %v685
    %687 = vdwg.mxu0
    %v688 = vpack.c.bf16 %v648, %v646
    %v689 = vpack.c.bf16 %v667, %v665
    %v691 = vsel %vm431, %v688, 0
    %v694 = vsel %vm431, %v689, 0
    %696 = vmatpush.bf16.xpose.msra.mxu0 0
    %697 = vmatpush.bf16.xpose.msra.mxu0 0
    %698 = vmatpush.bf16.xpose.msra.mxu0 0
    %699 = vmatpush.bf16.xpose.msra.mxu0 0
    %700 = vmatpush.bf16.xpose.msra.mxu0 0
    %701 = vmatpush.bf16.xpose.msra.mxu0 0
    %702 = vmatpush.bf16.xpose.msra.mxu0 0
    %703 = vmatpush.bf16.xpose.msra.mxu0 %v694
    %704 = vmatmul.bf16.gmra.mxu0 %v691
    %v705 = vpop.f32.mrf.mxu0
    %v706 = vadd.f32 0.0, %v705
    %v707 = vpop.f32.mrf.mxu0
    %v708 = vadd.f32 0.0, %v707
    %709 = vdwg.mxu0
    %v710 = vpack.c.bf16 %v686, %v684
    %v711 = vadd.f32 %v448, %v19
    %v712 = vadd.f32 %v450, %v20
    %v713 = vadd.f32 %v534, %v21
    %v714 = vadd.f32 %v536, %v22
    %v715 = vadd.f32 %v620, %v23
    %v716 = vadd.f32 %v622, %v24
    %v717 = vadd.f32 %v706, %v25
    %v718 = vadd.f32 %v708, %v26
    %vm719 = vcmask 130048
    %v720 = vsel %vm719, %v711, -inf
    %721 = vmax.xlane.f32.xlu0 %v720
    %v722 = vpop.xlane.xlu0 %721
    %v723 = vsel %vm719, %v712, -inf
    %724 = vmax.xlane.f32.xlu0 %v723
    %v725 = vpop.xlane.xlu0 %724
    %v726 = vsel %vm719, %v713, -inf
    %727 = vmax.xlane.f32.xlu0 %v726
    %v728 = vpop.xlane.xlu0 %727
    %v729 = vsel %vm719, %v714, -inf
    %730 = vmax.xlane.f32.xlu0 %v729
    %v731 = vpop.xlane.xlu0 %730
    %v732 = vsel %vm719, %v715, -inf
    %733 = vmax.xlane.f32.xlu0 %v732
    %v734 = vpop.xlane.xlu0 %733
    %v735 = vsel %vm719, %v716, -inf
    %736 = vmax.xlane.f32.xlu0 %v735
    %v737 = vpop.xlane.xlu0 %736
    %v738 = vsel %vm719, %v717, -inf
    %739 = vmax.xlane.f32.xlu0 %v738
    %v740 = vpop.xlane.xlu0 %739
    %v741 = vsel %vm719, %v718, -inf
    %742 = vmax.xlane.f32.xlu0 %v741
    %v743 = vpop.xlane.xlu0 %742
    %v744 = vsub.f32 %v711, %v722
    %v745 = vsub.f32 %v712, %v725
    %v746 = vsub.f32 %v713, %v728
    %v747 = vsub.f32 %v714, %v731
    %v748 = vsub.f32 %v715, %v734
    %v749 = vsub.f32 %v716, %v737
    %v750 = vsub.f32 %v717, %v740
    %v751 = vsub.f32 %v718, %v743
    %v752 = vmul.f32 %v744, 1.442695
    %v753 = vpow.pop %v752
    %v754 = vmul.f32 %v745, 1.442695
    %v755 = vpow.pop %v754
    %v756 = vmul.f32 %v746, 1.442695
    %v757 = vpow.pop %v756
    %v758 = vmul.f32 %v747, 1.442695
    %v759 = vpow.pop %v758
    %v760 = vmul.f32 %v748, 1.442695
    %v761 = vpow.pop %v760
    %v762 = vmul.f32 %v749, 1.442695
    %v763 = vpow.pop %v762
    %v764 = vmul.f32 %v750, 1.442695
    %v765 = vpow.pop %v764
    %v766 = vmul.f32 %v751, 1.442695
    %v767 = vpow.pop %v766
    %v768 = vsel %vm719, %v753, 0.0
    %769 = vadd.xlane.f32.xlu0 %v768
    %v770 = vpop.xlane.xlu0 %769
    %v771 = vsel %vm719, %v755, 0.0
    %772 = vadd.xlane.f32.xlu0 %v771
    %v773 = vpop.xlane.xlu0 %772
    %v774 = vsel %vm719, %v757, 0.0
    %775 = vadd.xlane.f32.xlu0 %v774
    %v776 = vpop.xlane.xlu0 %775
    %v777 = vsel %vm719, %v759, 0.0
    %778 = vadd.xlane.f32.xlu0 %v777
    %v779 = vpop.xlane.xlu0 %778
    %v780 = vsel %vm719, %v761, 0.0
    %781 = vadd.xlane.f32.xlu0 %v780
    %v782 = vpop.xlane.xlu0 %781
    %v783 = vsel %vm719, %v763, 0.0
    %784 = vadd.xlane.f32.xlu0 %v783
    %v785 = vpop.xlane.xlu0 %784
    %v786 = vsel %vm719, %v765, 0.0
    %787 = vadd.xlane.f32.xlu0 %v786
    %v788 = vpop.xlane.xlu0 %787
    %v789 = vsel %vm719, %v767, 0.0
    %790 = vadd.xlane.f32.xlu0 %v789
    %v791 = vpop.xlane.xlu0 %790
    %v792 = vrcp.pop %v770
    %v793 = vrcp.pop %v773
    %v794 = vrcp.pop %v776
    %v795 = vrcp.pop %v779
    %v796 = vrcp.pop %v782
    %v797 = vrcp.pop %v785
    %v798 = vrcp.pop %v788
    %v799 = vrcp.pop %v791
    %v800 = vmul.f32 %v753, %v792
    %v801 = vmul.f32 %v755, %v793
    %v802 = vmul.f32 %v757, %v794
    %v803 = vmul.f32 %v759, %v795
    %v804 = vmul.f32 %v761, %v796
    %v805 = vmul.f32 %v763, %v797
    %v806 = vmul.f32 %v765, %v798
    %v807 = vmul.f32 %v767, %v799
    %v808 = vpack.c.bf16 %v801, %v800
    %v810 = vsel %vm719, %v808, 0
    %812 = vmatpush.bf16.msra.mxu0 0
    %813 = vmatpush.bf16.msra.mxu0 0
    %814 = vmatpush.bf16.msra.mxu0 0
    %815 = vmatpush.bf16.msra.mxu0 0
    %816 = vmatpush.bf16.msra.mxu0 0
    %817 = vmatpush.bf16.msra.mxu0 0
    %818 = vmatpush.bf16.msra.mxu0 0
    %819 = vmatpush.bf16.msra.mxu0 %v452
    %820 = vmatmul.bf16.gmra.mxu0 %v810
    %v821 = vpop.f32.mrf.mxu0
    %v822 = vadd.f32 0.0, %v821
    %v823 = vpop.f32.mrf.mxu0
    %v824 = vadd.f32 0.0, %v823
    %825 = vdwg.mxu0
    %v826 = vld [vmem:[%s1 + $0x60] sm:$0xff]
    %v827 = vpack.c.bf16 %v826, %v826
    %v828 = vpack.c.bf16 %v824, %v822
    %v829 = vpack.c.bf16 %v803, %v802
    %v831 = vsel %vm719, %v829, 0
    %833 = vmatpush.bf16.msra.mxu0 0
    %834 = vmatpush.bf16.msra.mxu0 0
    %835 = vmatpush.bf16.msra.mxu0 0
    %836 = vmatpush.bf16.msra.mxu0 0
    %837 = vmatpush.bf16.msra.mxu0 0
    %838 = vmatpush.bf16.msra.mxu0 0
    %839 = vmatpush.bf16.msra.mxu0 0
    %840 = vmatpush.bf16.msra.mxu0 %v538
    %841 = vmatmul.bf16.gmra.mxu0 %v831
    %v842 = vpop.f32.mrf.mxu0
    %v843 = vadd.f32 0.0, %v842
    %v844 = vpop.f32.mrf.mxu0
    %v845 = vadd.f32 0.0, %v844
    %846 = vdwg.mxu0
    %v847 = vld [vmem:[%s1 + $0x68] sm:$0xff]
    %v848 = vpack.c.bf16 %v847, %v847
    %v849 = vpack.c.bf16 %v845, %v843
    %v851 = vsel %vm431, %v849, 0
    %vm853 = vcmask 1043456
    %v855 = vsel %vm853, %v848, 0
    %857 = vmatpush.bf16.msra.mxu0 0
    %858 = vmatpush.bf16.msra.mxu0 0
    %859 = vmatpush.bf16.msra.mxu0 0
    %860 = vmatpush.bf16.msra.mxu0 0
    %861 = vmatpush.bf16.msra.mxu0 0
    %862 = vmatpush.bf16.msra.mxu0 0
    %863 = vmatpush.bf16.msra.mxu0 0
    %864 = vmatpush.bf16.msra.mxu0 %v855
    %865 = vmatmul.bf16.gmra.mxu0 %v851
    %v866 = vpop.f32.mrf.mxu0
    %v867 = vadd.f32 0.0, %v866
    %v868 = vpop.f32.mrf.mxu0
    %v869 = vadd.f32 0.0, %v868
    %870 = vdwg.mxu0
    %v872 = vsel %vm431, %v828, 0
    %v875 = vsel %vm853, %v827, 0
    %877 = vmatpush.bf16.msra.mxu0 0
    %878 = vmatpush.bf16.msra.mxu0 0
    %879 = vmatpush.bf16.msra.mxu0 0
    %880 = vmatpush.bf16.msra.mxu0 0
    %881 = vmatpush.bf16.msra.mxu0 0
    %882 = vmatpush.bf16.msra.mxu0 0
    %883 = vmatpush.bf16.msra.mxu0 0
    %884 = vmatpush.bf16.msra.mxu0 %v875
    %885 = vmatmul.bf16.gmra.mxu0 %v872
    %v886 = vpop.f32.mrf.mxu0
    %v887 = vadd.f32 %v867, %v886
    %v888 = vpop.f32.mrf.mxu0
    %v889 = vadd.f32 %v869, %v888
    %890 = vdwg.mxu0
    %v891 = vpack.c.bf16 %v805, %v804
    %v893 = vsel %vm719, %v891, 0
    %895 = vmatpush.bf16.msra.mxu0 0
    %896 = vmatpush.bf16.msra.mxu0 0
    %897 = vmatpush.bf16.msra.mxu0 0
    %898 = vmatpush.bf16.msra.mxu0 0
    %899 = vmatpush.bf16.msra.mxu0 0
    %900 = vmatpush.bf16.msra.mxu0 0
    %901 = vmatpush.bf16.msra.mxu0 0
    %902 = vmatpush.bf16.msra.mxu0 %v624
    %903 = vmatmul.bf16.gmra.mxu0 %v893
    %v904 = vpop.f32.mrf.mxu0
    %v905 = vadd.f32 0.0, %v904
    %v906 = vpop.f32.mrf.mxu0
    %v907 = vadd.f32 0.0, %v906
    %908 = vdwg.mxu0
    %v909 = vld [vmem:[%s1 + $0x70] sm:$0xff]
    %v910 = vpack.c.bf16 %v909, %v909
    %v911 = vpack.c.bf16 %v907, %v905
    %v913 = vsel %vm431, %v911, 0
    %v916 = vsel %vm853, %v910, 0
    %918 = vmatpush.bf16.msra.mxu0 0
    %919 = vmatpush.bf16.msra.mxu0 0
    %920 = vmatpush.bf16.msra.mxu0 0
    %921 = vmatpush.bf16.msra.mxu0 0
    %922 = vmatpush.bf16.msra.mxu0 0
    %923 = vmatpush.bf16.msra.mxu0 0
    %924 = vmatpush.bf16.msra.mxu0 0
    %925 = vmatpush.bf16.msra.mxu0 %v916
    %926 = vmatmul.bf16.gmra.mxu0 %v913
    %v927 = vpop.f32.mrf.mxu0
    %v928 = vadd.f32 0.0, %v927
    %v929 = vpop.f32.mrf.mxu0
    %v930 = vadd.f32 0.0, %v929
    %931 = vdwg.mxu0
    %v932 = vadd.f32 %v887, %v928
    %v933 = vadd.f32 %v889, %v930
    %v934 = vpack.c.bf16 %v807, %v806
    %v936 = vsel %vm719, %v934, 0
    %938 = vmatpush.bf16.msra.mxu0 0
    %939 = vmatpush.bf16.msra.mxu0 0
    %940 = vmatpush.bf16.msra.mxu0 0
    %941 = vmatpush.bf16.msra.mxu0 0
    %942 = vmatpush.bf16.msra.mxu0 0
    %943 = vmatpush.bf16.msra.mxu0 0
    %944 = vmatpush.bf16.msra.mxu0 0
    %945 = vmatpush.bf16.msra.mxu0 %v710
    %946 = vmatmul.bf16.gmra.mxu0 %v936
    %v947 = vpop.f32.mrf.mxu0
    %v948 = vadd.f32 0.0, %v947
    %v949 = vpop.f32.mrf.mxu0
    %v950 = vadd.f32 0.0, %v949
    %951 = vdwg.mxu0
    %v952 = vld [vmem:[%s1 + $0x78] sm:$0xff]
    %v953 = vpack.c.bf16 %v952, %v952
    %v954 = vpack.c.bf16 %v950, %v948
    %v956 = vsel %vm431, %v954, 0
    %v959 = vsel %vm853, %v953, 0
    %961 = vmatpush.bf16.msra.mxu0 0
    %962 = vmatpush.bf16.msra.mxu0 0
    %963 = vmatpush.bf16.msra.mxu0 0
    %964 = vmatpush.bf16.msra.mxu0 0
    %965 = vmatpush.bf16.msra.mxu0 0
    %966 = vmatpush.bf16.msra.mxu0 0
    %967 = vmatpush.bf16.msra.mxu0 0
    %968 = vmatpush.bf16.msra.mxu0 %v959
    %969 = vmatmul.bf16.gmra.mxu0 %v956
    %v970 = vpop.f32.mrf.mxu0
    %v971 = vadd.f32 0.0, %v970
    %v972 = vpop.f32.mrf.mxu0
    %v973 = vadd.f32 0.0, %v972
    %974 = vdwg.mxu0
    %v975 = vadd.f32 %v932, %v971
    %v976 = vadd.f32 %v933, %v973
    %v977 = vld [vmem:[%s1 + $0xe0] sm:$0x1]
    %v978 = vperm.slane %v977, 0
    %v979 = vadd.f32 %v975, %v978
    %v980 = vadd.f32 %v976, %v978
    %v981 = vadd.f32 %v979, %v355
    %v982 = vadd.f32 %v980, %v356
    %v983 = vld [vmem:[%s1 + $0xe2] sm:$0x1]
    %v984 = vld [vmem:[%s1 + $0xe3] sm:$0x1]
    %v985 = vsel %vm367, %v981, 0.0
    %986 = vadd.xlane.f32.xlu0 %v985
    %v987 = vpop.xlane.xlu0 %986
    %v988 = vsel %vm367, %v982, 0.0
    %989 = vadd.xlane.f32.xlu0 %v988
    %v990 = vpop.xlane.xlu0 %989
    %v991 = vrcp.pop 32.0
    %v992 = vmul.f32 32.0, %v991
    %v993 = vsub.f32 1.0, %v992
    %v994 = vmul.f32 %v991, %v993
    %v995 = vadd.f32 %v991, %v994
    %vm996 = vweird.f32 %v991
    %v997 = vsel %vm996, %v991, %v995
    %v998 = vmul.f32 %v987, %v997
    %v999 = vmul.f32 %v990, %v997
    %v1000 = vsub.f32 %v981, %v998
    %v1001 = vsub.f32 %v982, %v999
    %v1002 = vmul.f32 %v1000, %v1000
    %v1003 = vmul.f32 %v1001, %v1001
    %v1004 = vsel %vm367, %v1002, 0.0
    %1005 = vadd.xlane.f32.xlu0 %v1004
    %v1006 = vpop.xlane.xlu0 %1005
    %v1007 = vsel %vm367, %v1003, 0.0
    %1008 = vadd.xlane.f32.xlu0 %v1007
    %v1009 = vpop.xlane.xlu0 %1008
    %v1010 = vmul.f32 %v1006, %v997
    %v1011 = vmul.f32 %v1009, %v997
    %v1012 = vadd.f32 %v1010, 1e-05
    %v1013 = vadd.f32 %v1011, 1e-05
    %v1014 = vrsqrt.pop %v1012
    %v1015 = vmul.f32 %v1014, %v1012
    %v1016 = vmul.f32 %v1015, %v1014
    %v1017 = vmul.f32 0.5, %v1016
    %v1018 = vsub.f32 1.5, %v1017
    %v1019 = vmul.f32 %v1014, %v1018
    %vm1020 = vweird.f32 %v1012
    %vm1021 = vweird.f32 %v1014
    %vm1022 = vmor %vm1020, %vm1021
    %v1023 = vsel %vm1022, %v1014, %v1019
    %v1024 = vrsqrt.pop %v1013
    %v1025 = vmul.f32 %v1024, %v1013
    %v1026 = vmul.f32 %v1025, %v1024
    %v1027 = vmul.f32 0.5, %v1026
    %v1028 = vsub.f32 1.5, %v1027
    %v1029 = vmul.f32 %v1024, %v1028
    %vm1030 = vweird.f32 %v1013
    %vm1031 = vweird.f32 %v1024
    %vm1032 = vmor %vm1030, %vm1031
    %v1033 = vsel %vm1032, %v1024, %v1029
    %v1034 = vmul.f32 %v1000, %v1023
    %v1035 = vmul.f32 %v1001, %v1033
    %v1036 = vperm.slane %v983, 0
    %v1037 = vmul.f32 %v1034, %v1036
    %v1038 = vmul.f32 %v1035, %v1036
    %v1039 = vperm.slane %v984, 0
    %v1040 = vadd.f32 %v1037, %v1039
    %v1041 = vadd.f32 %v1038, %v1039
    %v1042 = vld [vmem:[%s1 + $0xc0] sm:$0xff]
    %v1043 = vld [vmem:[%s1 + $0xc8] sm:$0xff]
    %v1044 = vld [vmem:[%s1 + $0xd0] sm:$0xff]
    %v1045 = vld [vmem:[%s1 + $0xd8] sm:$0xff]
    %v1046 = vpack.c.bf16 %v1043, %v1042
    %v1047 = vpack.c.bf16 %v1045, %v1044
    %v1048 = vld [vmem:[%s1 + $0x80] sm:$0xff]
    %v1049 = vld [vmem:[%s1 + $0x88] sm:$0xff]
    %v1050 = vld [vmem:[%s1 + $0x90] sm:$0xff]
    %v1051 = vld [vmem:[%s1 + $0x98] sm:$0xff]
    %v1052 = vld [vmem:[%s1 + $0xa0] sm:$0xff]
    %v1053 = vld [vmem:[%s1 + $0xa8] sm:$0xff]
    %v1054 = vld [vmem:[%s1 + $0xb0] sm:$0xff]
    %v1055 = vld [vmem:[%s1 + $0xb8] sm:$0xff]
    %v1056 = vpack.c.bf16 %v1049, %v1048
    %v1057 = vpack.c.bf16 %v1051, %v1050
    %v1058 = vpack.c.bf16 %v1053, %v1052
    %v1059 = vpack.c.bf16 %v1055, %v1054
    %v1060 = vpack.c.bf16 %v1041, %v1040
    %v1061 = vld [vmem:[%s1 + $0xe8] sm:$0x1]
    %v1062 = vperm.slane %v1061, 0
    %v1064 = vsel %vm367, %v1060, 0
    %1066 = vmatpush.bf16.msra.mxu0 0
    %1067 = vmatpush.bf16.msra.mxu0 0
    %1068 = vmatpush.bf16.msra.mxu0 0
    %1069 = vmatpush.bf16.msra.mxu0 0
    %1070 = vmatpush.bf16.msra.mxu0 0
    %1071 = vmatpush.bf16.msra.mxu0 0
    %1072 = vmatpush.bf16.msra.mxu0 %v1047
    %1073 = vmatpush.bf16.msra.mxu0 %v1046
    %1074 = vmatmul.bf16.gmra.mxu0 %v1064
    %v1075 = vpop.f32.mrf.mxu0
    %v1076 = vadd.f32 %v1062, %v1075
    %v1077 = vpop.f32.mrf.mxu0
    %v1078 = vadd.f32 %v1062, %v1077
    %1079 = vdwg.mxu0
    %v1080 = vmax.f32 %v1076, 0.0
    %v1081 = vmax.f32 %v1078, 0.0
    %v1082 = vpack.c.bf16 %v1081, %v1080
    %v1083 = vld [vmem:[%s1 + $0xe1] sm:$0x1]
    %v1084 = vperm.slane %v1083, 0
    %vm1085 = vcmask 523264
    %v1087 = vsel %vm1085, %v1082, 0
    %1089 = vmatpush.bf16.msra.mxu0 0
    %1090 = vmatpush.bf16.msra.mxu0 0
    %1091 = vmatpush.bf16.msra.mxu0 0
    %1092 = vmatpush.bf16.msra.mxu0 0
    %1093 = vmatpush.bf16.msra.mxu0 %v1059
    %1094 = vmatpush.bf16.msra.mxu0 %v1058
    %1095 = vmatpush.bf16.msra.mxu0 %v1057
    %1096 = vmatpush.bf16.msra.mxu0 %v1056
    %1097 = vmatmul.bf16.gmra.mxu0 %v1087
    %v1098 = vpop.f32.mrf.mxu0
    %v1099 = vadd.f32 %v1084, %v1098
    %v1100 = vpop.f32.mrf.mxu0
    %v1101 = vadd.f32 %v1084, %v1100
    %1102 = vdwg.mxu0
    %v1103 = vadd.f32 %v1099, %v1040
    %v1104 = vadd.f32 %v1101, %v1041
    %v1105 = vld [vmem:[%s1 + $0xe4] sm:$0x1]
    %v1106 = vld [vmem:[%s1 + $0xe5] sm:$0x1]
    %v1107 = vsel %vm367, %v1103, 0.0
    %1108 = vadd.xlane.f32.xlu0 %v1107
    %v1109 = vpop.xlane.xlu0 %1108
    %v1110 = vsel %vm367, %v1104, 0.0
    %1111 = vadd.xlane.f32.xlu0 %v1110
    %v1112 = vpop.xlane.xlu0 %1111
    %v1113 = vmul.f32 %v1109, %v997
    %v1114 = vmul.f32 %v1112, %v997
    %v1115 = vsub.f32 %v1103, %v1113
    %v1116 = vsub.f32 %v1104, %v1114
    %v1117 = vmul.f32 %v1115, %v1115
    %v1118 = vmul.f32 %v1116, %v1116
    %v1119 = vsel %vm367, %v1117, 0.0
    %1120 = vadd.xlane.f32.xlu0 %v1119
    %v1121 = vpop.xlane.xlu0 %1120
    %v1122 = vsel %vm367, %v1118, 0.0
    %1123 = vadd.xlane.f32.xlu0 %v1122
    %v1124 = vpop.xlane.xlu0 %1123
    %v1125 = vmul.f32 %v1121, %v997
    %v1126 = vmul.f32 %v1124, %v997
    %v1127 = vadd.f32 %v1125, 1e-05
    %v1128 = vadd.f32 %v1126, 1e-05
    %v1129 = vrsqrt.pop %v1127
    %v1130 = vmul.f32 %v1129, %v1127
    %v1131 = vmul.f32 %v1130, %v1129
    %v1132 = vmul.f32 0.5, %v1131
    %v1133 = vsub.f32 1.5, %v1132
    %v1134 = vmul.f32 %v1129, %v1133
    %vm1135 = vweird.f32 %v1127
    %vm1136 = vweird.f32 %v1129
    %vm1137 = vmor %vm1135, %vm1136
    %v1138 = vsel %vm1137, %v1129, %v1134
    %v1139 = vrsqrt.pop %v1128
    %v1140 = vmul.f32 %v1139, %v1128
    %v1141 = vmul.f32 %v1140, %v1139
    %v1142 = vmul.f32 0.5, %v1141
    %v1143 = vsub.f32 1.5, %v1142
    %v1144 = vmul.f32 %v1139, %v1143
    %vm1145 = vweird.f32 %v1128
    %vm1146 = vweird.f32 %v1139
    %vm1147 = vmor %vm1145, %vm1146
    %v1148 = vsel %vm1147, %v1139, %v1144
    %v1149 = vmul.f32 %v1115, %v1138
    %v1150 = vmul.f32 %v1116, %v1148
    %v1151 = vperm.slane %v1105, 0
    %v1152 = vmul.f32 %v1149, %v1151
    %v1153 = vmul.f32 %v1150, %v1151
    %v1154 = vperm.slane %v1106, 0
    %v1155 = vadd.f32 %v1152, %v1154
    %v1156 = vadd.f32 %v1153, %v1154
    %1157 = vst.msk [vmem:[#allocation2] sm:$0xff] %vm367, %v1155
    %1158 = vst.msk [vmem:[#allocation2 + $0x8] sm:$0xff] %vm367, %v1156
    // Predicated region
    $region10: #{decoder_p_pallas.1} parent=1 // pred_check
      _
    $region11: #{decoder_p_pallas.1} parent=1 // pred_check_branch
      %1160 = sbr.rel (0) target = $region13
    $region12: #{decoder_p_pallas.1} parent=1 // pred_region
      %1162 = vsyncadd [#allocation3], 0
      %s1163 = sshll.u32 [#allocation2], 4
      %s1164 = int_to_ptr.vmem [resolvable:$true] %s1163
      %s1165 = sshll.u32 %s2, 4
      %s1166 = int_to_ptr.hbm [resolvable:$true] %s1165
      %1171 = dma.vmem_to_hbm [thread:$0]  %s1164, 256, %s1166, [#allocation3], 128, 128, 8
    $region13: #{decoder_p_pallas.1} parent=1 // pred_fallthru
      _
    // Predicated region
    $region14: #{decoder_p_pallas.1} parent=1 // pred_check
      _
    $region15: #{decoder_p_pallas.1} parent=1 // pred_check_branch
      %1173 = sbr.rel (0) target = $region17
    $region16: #{decoder_p_pallas.1} parent=1 // pred_region
      %1175 = dma.done [#allocation3], 256
    $region17: #{decoder_p_pallas.1} parent=1 // pred_fallthru
      _
    %1176 = vsyncpa [#allocation3], 1

</llo_original>
